<compile_context>
chip_gen: v7x
topology: tpu7x:2x2x1
jax: 0.10.0
libtpu: 0.0.40
codegen_flags: <defaults>
</compile_context>

<pallas_src>
import functools

import jax
import jax.numpy as jnp
from jax.experimental import pallas as pl
from jax.experimental.pallas import tpu as pltpu

IN_F = 8
HIDDEN = 1024
OUT_F = 8
K_AUG = 16   # IN_F + 1 (ones row for the folded fc1 bias), padded to a sublane multiple
LANE = 128


def mlp_kernel(x_ref, w1_ref, w2_ref, b2_ref, o_ref, *, mxu_bf16):
    xa = x_ref[...]          # (K_AUG, tile_b)   batch on lanes
    w1 = w1_ref[...]         # (HIDDEN, K_AUG)   [W1 | b1 | 0]  (resident)
    w2 = w2_ref[...]         # (OUT_F, HIDDEN)   (resident)
    if mxu_bf16:
        # bf16 MXU operands, f32 accumulation (v5e/v6e throughput lever).
        xa = xa.astype(jnp.bfloat16)
        w1 = w1.astype(jnp.bfloat16)
        w2 = w2.astype(jnp.bfloat16)
    # fc1 + folded bias: (HIDDEN, K_AUG) . (K_AUG, tile_b) -> (HIDDEN, tile_b)
    ht = jnp.dot(w1, xa, preferred_element_type=jnp.float32)
    ht = jnp.maximum(ht, 0.0)                      # ReLU on the VPU, f32
    if mxu_bf16:
        ht = ht.astype(jnp.bfloat16)
    # fc2: (OUT_F, HIDDEN) . (HIDDEN, tile_b) -> (OUT_F, tile_b)
    ot = jnp.dot(w2, ht, preferred_element_type=jnp.float32)
    o_ref[...] = (ot + b2_ref[...]).astype(o_ref.dtype)   # (8,1) lane-broadcast add


@functools.partial(jax.jit, static_argnames=("tile_b", "mxu_bf16"))
def testnet_forward(x, w1, b1, w2, b2, *, tile_b=512, mxu_bf16=False):
    """TestNet forward: x (B, 8) f32 -> (B, 8) f32.

    w1: (1024, 8), b1: (1024,)  -- PyTorch nn.Linear(8, 1024) layout
    w2: (8, 1024), b2: (8,)     -- PyTorch nn.Linear(1024, 8) layout
    """
    B = x.shape[0]

    # --- tile selection (shapes are static under jit) -------------------------
    tile_b = max(LANE, (tile_b // LANE) * LANE)           # multiple of 128
    b_lane = max(LANE, ((B + LANE - 1) // LANE) * LANE)   # batch rounded to lanes
    tile = min(tile_b, b_lane)
    # Keep >= 2 grid steps when the batch allows, so v7x megacore ("parallel")
    # has work to shard across both TensorCores.
    if b_lane >= 2 * LANE and b_lane // tile < 2:
        tile = max(LANE, (b_lane // 2 // LANE) * LANE)
    grid_b = pl.cdiv(b_lane, tile)
    b_pad = grid_b * tile

    # --- wrapper layout plumbing (one pass, only when needed) -----------------
    x_t = x.T                                             # (8, B)
    if b_pad != B:
        x_t = jnp.pad(x_t, ((0, 0), (0, b_pad - B)))      # zero-fill pad columns
    x_aug = jnp.concatenate(
        [x_t,
         jnp.ones((1, b_pad), x.dtype),                               # ones -> fc1 bias
         jnp.zeros((K_AUG - IN_F - 1, b_pad), x.dtype)], axis=0)      # (16, b_pad)
    w1_aug = jnp.concatenate(
        [w1, b1.reshape(HIDDEN, 1),
         jnp.zeros((HIDDEN, K_AUG - IN_F - 1), w1.dtype)], axis=1)    # (1024, 16)
    b2_c = b2.reshape(OUT_F, 1)

    out_t = pl.pallas_call(
        functools.partial(mlp_kernel, mxu_bf16=mxu_bf16),
        out_shape=jax.ShapeDtypeStruct((OUT_F, b_pad), x.dtype),
        grid=(grid_b,),
        in_specs=[
            pl.BlockSpec((K_AUG, tile), lambda i: (0, i)),    # x^T batch tile
            pl.BlockSpec((HIDDEN, K_AUG), lambda i: (0, 0)),  # [W1|b1] resident
            pl.BlockSpec((OUT_F, HIDDEN), lambda i: (0, 0)),  # W2      resident
            pl.BlockSpec((OUT_F, 1), lambda i: (0, 0)),       # b2      resident
        ],
        out_specs=pl.BlockSpec((OUT_F, tile), lambda i: (0, i)),
        compiler_params=pltpu.CompilerParams(
            dimension_semantics=("parallel",),   # megacore sharding on v7x
        ),
    )(x_aug, w1_aug, w2, b2_c)

    # Back to the caller's (B, 8) layout; drop batch padding (fused slice+T).
    return out_t.T[:B]


def init_params(key):
    """Deterministic init mimicking nn.Linear's U(-1/sqrt(fan_in), 1/sqrt(fan_in))."""
    k1, k2, k3, k4 = jax.random.split(key, 4)
    bound1 = 1.0 / jnp.sqrt(float(IN_F))
    bound2 = 1.0 / jnp.sqrt(float(HIDDEN))
    # PyTorch stores W as (out, in).
    w1 = jax.random.uniform(k1, (HIDDEN, IN_F), jnp.float32, -bound1, bound1)
    b1 = jax.random.uniform(k2, (HIDDEN,), jnp.float32, -bound1, bound1)
    w2 = jax.random.uniform(k3, (OUT_F, HIDDEN), jnp.float32, -bound2, bound2)
    b2 = jax.random.uniform(k4, (OUT_F,), jnp.float32, -bound2, bound2)
    return w1, b1, w2, b2


if __name__ == "__main__":
    key = jax.random.PRNGKey(0)
    kx, kp, kx2 = jax.random.split(key, 3)

    w1, b1, w2, b2 = init_params(kp)

    def ref_forward(xx):
        return jnp.maximum(xx @ w1.T + b1, 0.0) @ w2.T + b2

    # Small batch (matches the original test's tiny input): single-tile grid.
    x = jax.random.normal(kx, (8, IN_F), jnp.float32)
    out = jax.block_until_ready(testnet_forward(x, w1, b1, w2, b2))
    ref = ref_forward(x)
    assert out.shape == (8, OUT_F)
    assert jnp.allclose(out, ref, atol=1e-5, rtol=1e-5), float(
        jnp.max(jnp.abs(out - ref)))

    # Ragged batch: exercises padding, multi-step grid and the un-pad slice.
    x2 = jax.random.normal(kx2, (300, IN_F), jnp.float32)
    out2 = jax.block_until_ready(testnet_forward(x2, w1, b1, w2, b2))
    ref2 = ref_forward(x2)
    assert out2.shape == (300, OUT_F)
    assert jnp.allclose(out2, ref2, atol=1e-5, rtol=1e-5), float(
        jnp.max(jnp.abs(out2 - ref2)))

    # bf16-operand MXU path (v5e/v6e throughput lever): looser tolerance.
    out_bf = jax.block_until_ready(
        testnet_forward(x, w1, b1, w2, b2, mxu_bf16=True))
    assert jnp.allclose(out_bf, ref, atol=5e-2, rtol=5e-2), float(
        jnp.max(jnp.abs(out_bf - ref)))

    print("KERNEL_OK")
</pallas_src>

<mosaic_0001>
module attributes {stable_mosaic.version = 11 : i64} {
  func.func @mlp_kernel(%arg0: i32, %arg1: memref<16x128xf32, #tpu.memory_space<vmem>>, %arg2: memref<1024x16xf32, #tpu.memory_space<vmem>>, %arg3: memref<8x1024xf32, #tpu.memory_space<vmem>>, %arg4: memref<8x1xf32, #tpu.memory_space<vmem>>, %arg5: memref<8x128xf32, #tpu.memory_space<vmem>>) attributes {dimension_semantics = [#tpu.dimension_semantics<parallel>], iteration_bounds = array<i64: 1>, scalar_prefetch = 0 : i64, scratch_operands = 0 : i64, tpu.core_type = #tpu.core_type<tc>, window_params = [{transform_indices = @transform_0, window_bounds = array<i64: 16, 128>}, {pipeline_mode = #tpu.pipeline_mode<synchronous>, transform_indices = @transform_1, window_bounds = array<i64: 1024, 16>}, {pipeline_mode = #tpu.pipeline_mode<synchronous>, transform_indices = @transform_2, window_bounds = array<i64: 8, 1024>}, {pipeline_mode = #tpu.pipeline_mode<synchronous>, transform_indices = @transform_3, window_bounds = array<i64: 8, 1>}, {transform_indices = @transform_4, window_bounds = array<i64: 8, 128>}]} {
    %c0 = arith.constant 0 : index
    %c0_0 = arith.constant 0 : index
    %0 = vector.load %arg1[%c0, %c0_0] : memref<16x128xf32, #tpu.memory_space<vmem>>, vector<16x128xf32>
    %c0_1 = arith.constant 0 : index
    %c0_2 = arith.constant 0 : index
    %1 = vector.load %arg2[%c0_1, %c0_2] : memref<1024x16xf32, #tpu.memory_space<vmem>>, vector<1024x16xf32>
    %c0_3 = arith.constant 0 : index
    %c0_4 = arith.constant 0 : index
    %2 = vector.load %arg3[%c0_3, %c0_4] : memref<8x1024xf32, #tpu.memory_space<vmem>>, vector<8x1024xf32>
    %cst = arith.constant dense<0.000000e+00> : vector<1024x128xf32>
    %3 = tpu.matmul %1, %0, %cst {dimension_numbers = #tpu.dot_dimension_numbers<[1], [0], [0], [1], [0, 0, 1, 1], [], []>} : vector<1024x16xf32>, vector<16x128xf32>, vector<1024x128xf32> -> vector<1024x128xf32>
    %cst_5 = arith.constant 0.000000e+00 : f32
    %4 = vector.broadcast %cst_5 : f32 to vector<1024x128xf32>
    %5 = arith.maximumf %3, %4 : vector<1024x128xf32>
    %cst_6 = arith.constant dense<0.000000e+00> : vector<8x128xf32>
    %6 = tpu.matmul %2, %5, %cst_6 {dimension_numbers = #tpu.dot_dimension_numbers<[1], [0], [0], [1], [0, 0, 1, 1], [], []>} : vector<8x1024xf32>, vector<1024x128xf32>, vector<8x128xf32> -> vector<8x128xf32>
    %c0_7 = arith.constant 0 : index
    %c0_8 = arith.constant 0 : index
    %7 = vector.load %arg4[%c0_7, %c0_8] : memref<8x1xf32, #tpu.memory_space<vmem>>, vector<8x1xf32>
    %8 = vector.broadcast %7 : vector<8x1xf32> to vector<8x128xf32>
    %9 = arith.addf %6, %8 : vector<8x128xf32>
    %c0_9 = arith.constant 0 : index
    %c0_10 = arith.constant 0 : index
    %10 = vector.load %arg5[%c0_9, %c0_10] : memref<8x128xf32, #tpu.memory_space<vmem>>, vector<8x128xf32>
    tpu.vector_store %arg5[%c0_9, %c0_10], %9 {strides = array<i32>} : memref<8x128xf32, #tpu.memory_space<vmem>>, vector<8x128xf32>,
    return
  }
  func.func @transform_0(%arg0: i32) -> (i32, i32) {
    %c0_i32 = arith.constant 0 : i32
    %c0_i32_0 = arith.constant 0 : i32
    return %c0_i32, %arg0 : i32, i32
  }
  func.func @transform_1(%arg0: i32) -> (i32, i32) {
    %c0_i32 = arith.constant 0 : i32
    %c0_i32_0 = arith.constant 0 : i32
    %c0_i32_1 = arith.constant 0 : i32
    return %c0_i32, %c0_i32_0 : i32, i32
  }
  func.func @transform_2(%arg0: i32) -> (i32, i32) {
    %c0_i32 = arith.constant 0 : i32
    %c0_i32_0 = arith.constant 0 : i32
    %c0_i32_1 = arith.constant 0 : i32
    return %c0_i32, %c0_i32_0 : i32, i32
  }
  func.func @transform_3(%arg0: i32) -> (i32, i32) {
    %c0_i32 = arith.constant 0 : i32
    %c0_i32_0 = arith.constant 0 : i32
    %c0_i32_1 = arith.constant 0 : i32
    return %c0_i32, %c0_i32_0 : i32, i32
  }
  func.func @transform_4(%arg0: i32) -> (i32, i32) {
    %c0_i32 = arith.constant 0 : i32
    %c0_i32_0 = arith.constant 0 : i32
    return %c0_i32, %arg0 : i32, i32
  }
}

</mosaic_0001>

<llo_original>
// kernel: testnet_forward.1
$region0: #{testnet_forward.1}
  #allocation0 [shape = 'u32[]', space=smem, size = 0x4, offset = 0x4, fixed_abs, tag = 'smem constant byte address 0x4 - core index']
  #allocation1 [shape = 'u32[144,128]{1,0:T(1,128)}', space=vmem, size = 0x12000, scoped, tag = 'internal scratch']
  %s0 = inlined_call_operand.vmem [shape: f32[16,128], index: 0, kind: input, shape index: {}]
  %s1 = inlined_call_operand.vmem [shape: f32[1024,16], index: 1, kind: input, shape index: {}]
  %s2 = inlined_call_operand.vmem [shape: f32[8,1024], index: 2, kind: input, shape index: {}]
  %s3 = inlined_call_operand.vmem [shape: f32[8,1], index: 3, kind: input, shape index: {}]
  %s4 = inlined_call_operand.vmem [shape: f32[8,128], index: 4, kind: output, shape index: {}]
  %s5 = sld [smem:[#allocation0]]
  $region26: #{testnet_forward.1} parent=0
    _
  %s7 = ssub.s32 1, %s5
  %s8 = scalar_select 0, %s7, %s5
  // Predicated region
  $region2: #{testnet_forward.1} parent=0 // pred_check
    _
  $region3: #{testnet_forward.1} parent=0 // pred_check_branch
    %10 = sbr.rel (0) target = $region5
  $region4: #{testnet_forward.1} parent=0 // pred_region
    _
  $region5: #{testnet_forward.1} parent=0 // pred_fallthru
    _
  // Predicated region
  $region6: #{testnet_forward.1} parent=0 // pred_check
    _
  $region7: #{testnet_forward.1} parent=0 // pred_check_branch
    %12 = sbr.rel (0) target = $region9
  $region8: #{testnet_forward.1} parent=0 // pred_region
    _
  $region9: #{testnet_forward.1} parent=0 // pred_fallthru
    _
  // Predicated region
  $region10: #{testnet_forward.1} parent=0 // pred_check
    _
  $region11: #{testnet_forward.1} parent=0 // pred_check_branch
    %14 = sbr.rel (0) target = $region13
  $region12: #{testnet_forward.1} parent=0 // pred_region
    _
  $region13: #{testnet_forward.1} parent=0 // pred_fallthru
    _
  // Predicated region
  $region14: #{testnet_forward.1} parent=0 // pred_check
    _
  $region15: #{testnet_forward.1} parent=0 // pred_check_branch
    %16 = sbr.rel (0) target = $region17
  $region16: #{testnet_forward.1} parent=0 // pred_region
    _
  $region17: #{testnet_forward.1} parent=0 // pred_fallthru
    _
  %v17 = vld [vmem:[%s0] sm:$0xff]
  %v18 = vld [vmem:[%s0 + $0x8] sm:$0xff]
  %v19 = vld [vmem:[%s1] sm:$0xff]
  %v20 = vld [vmem:[%s1 + $0x8] sm:$0xff]
  %v21 = vld [vmem:[%s1 + $0x10] sm:$0xff]
  %v22 = vld [vmem:[%s1 + $0x18] sm:$0xff]
  %v23 = vld [vmem:[%s1 + $0x20] sm:$0xff]
  %v24 = vld [vmem:[%s1 + $0x28] sm:$0xff]
  %v25 = vld [vmem:[%s1 + $0x30] sm:$0xff]
  %v26 = vld [vmem:[%s1 + $0x38] sm:$0xff]
  %v27 = vld [vmem:[%s1 + $0x40] sm:$0xff]
  %v28 = vld [vmem:[%s1 + $0x48] sm:$0xff]
  %v29 = vld [vmem:[%s1 + $0x50] sm:$0xff]
  %v30 = vld [vmem:[%s1 + $0x58] sm:$0xff]
  %v31 = vld [vmem:[%s1 + $0x60] sm:$0xff]
  %v32 = vld [vmem:[%s1 + $0x68] sm:$0xff]
  %v33 = vld [vmem:[%s1 + $0x70] sm:$0xff]
  %v34 = vld [vmem:[%s1 + $0x78] sm:$0xff]
  %v35 = vld [vmem:[%s1 + $0x80] sm:$0xff]
  %v36 = vld [vmem:[%s1 + $0x88] sm:$0xff]
  %v37 = vld [vmem:[%s1 + $0x90] sm:$0xff]
  %v38 = vld [vmem:[%s1 + $0x98] sm:$0xff]
  %v39 = vld [vmem:[%s1 + $0xa0] sm:$0xff]
  %v40 = vld [vmem:[%s1 + $0xa8] sm:$0xff]
  %v41 = vld [vmem:[%s1 + $0xb0] sm:$0xff]
  %v42 = vld [vmem:[%s1 + $0xb8] sm:$0xff]
  %v43 = vld [vmem:[%s1 + $0xc0] sm:$0xff]
  %v44 = vld [vmem:[%s1 + $0xc8] sm:$0xff]
  %v45 = vld [vmem:[%s1 + $0xd0] sm:$0xff]
  %v46 = vld [vmem:[%s1 + $0xd8] sm:$0xff]
  %v47 = vld [vmem:[%s1 + $0xe0] sm:$0xff]
  %v48 = vld [vmem:[%s1 + $0xe8] sm:$0xff]
  %v49 = vld [vmem:[%s1 + $0xf0] sm:$0xff]
  %v50 = vld [vmem:[%s1 + $0xf8] sm:$0xff]
  %v51 = vld [vmem:[%s1 + $0x100] sm:$0xff]
  %v52 = vld [vmem:[%s1 + $0x108] sm:$0xff]
  %v53 = vld [vmem:[%s1 + $0x110] sm:$0xff]
  %v54 = vld [vmem:[%s1 + $0x118] sm:$0xff]
  %v55 = vld [vmem:[%s1 + $0x120] sm:$0xff]
  %v56 = vld [vmem:[%s1 + $0x128] sm:$0xff]
  %v57 = vld [vmem:[%s1 + $0x130] sm:$0xff]
  %v58 = vld [vmem:[%s1 + $0x138] sm:$0xff]
  %v59 = vld [vmem:[%s1 + $0x140] sm:$0xff]
  %v60 = vld [vmem:[%s1 + $0x148] sm:$0xff]
  %v61 = vld [vmem:[%s1 + $0x150] sm:$0xff]
  %v62 = vld [vmem:[%s1 + $0x158] sm:$0xff]
  %v63 = vld [vmem:[%s1 + $0x160] sm:$0xff]
  %v64 = vld [vmem:[%s1 + $0x168] sm:$0xff]
  %v65 = vld [vmem:[%s1 + $0x170] sm:$0xff]
  %v66 = vld [vmem:[%s1 + $0x178] sm:$0xff]
  %v67 = vld [vmem:[%s1 + $0x180] sm:$0xff]
  %v68 = vld [vmem:[%s1 + $0x188] sm:$0xff]
  %v69 = vld [vmem:[%s1 + $0x190] sm:$0xff]
  %v70 = vld [vmem:[%s1 + $0x198] sm:$0xff]
  %v71 = vld [vmem:[%s1 + $0x1a0] sm:$0xff]
  %v72 = vld [vmem:[%s1 + $0x1a8] sm:$0xff]
  %v73 = vld [vmem:[%s1 + $0x1b0] sm:$0xff]
  %v74 = vld [vmem:[%s1 + $0x1b8] sm:$0xff]
  %v75 = vld [vmem:[%s1 + $0x1c0] sm:$0xff]
  %v76 = vld [vmem:[%s1 + $0x1c8] sm:$0xff]
  %v77 = vld [vmem:[%s1 + $0x1d0] sm:$0xff]
  %v78 = vld [vmem:[%s1 + $0x1d8] sm:$0xff]
  %v79 = vld [vmem:[%s1 + $0x1e0] sm:$0xff]
  %v80 = vld [vmem:[%s1 + $0x1e8] sm:$0xff]
  %v81 = vld [vmem:[%s1 + $0x1f0] sm:$0xff]
  %v82 = vld [vmem:[%s1 + $0x1f8] sm:$0xff]
  %v83 = vld [vmem:[%s1 + $0x200] sm:$0xff]
  %v84 = vld [vmem:[%s1 + $0x208] sm:$0xff]
  %v85 = vld [vmem:[%s1 + $0x210] sm:$0xff]
  %v86 = vld [vmem:[%s1 + $0x218] sm:$0xff]
  %v87 = vld [vmem:[%s1 + $0x220] sm:$0xff]
  %v88 = vld [vmem:[%s1 + $0x228] sm:$0xff]
  %v89 = vld [vmem:[%s1 + $0x230] sm:$0xff]
  %v90 = vld [vmem:[%s1 + $0x238] sm:$0xff]
  %v91 = vld [vmem:[%s1 + $0x240] sm:$0xff]
  %v92 = vld [vmem:[%s1 + $0x248] sm:$0xff]
  %v93 = vld [vmem:[%s1 + $0x250] sm:$0xff]
  %v94 = vld [vmem:[%s1 + $0x258] sm:$0xff]
  %v95 = vld [vmem:[%s1 + $0x260] sm:$0xff]
  %v96 = vld [vmem:[%s1 + $0x268] sm:$0xff]
  %v97 = vld [vmem:[%s1 + $0x270] sm:$0xff]
  %v98 = vld [vmem:[%s1 + $0x278] sm:$0xff]
  %v99 = vld [vmem:[%s1 + $0x280] sm:$0xff]
  %v100 = vld [vmem:[%s1 + $0x288] sm:$0xff]
  %v101 = vld [vmem:[%s1 + $0x290] sm:$0xff]
  %v102 = vld [vmem:[%s1 + $0x298] sm:$0xff]
  %v103 = vld [vmem:[%s1 + $0x2a0] sm:$0xff]
  %v104 = vld [vmem:[%s1 + $0x2a8] sm:$0xff]
  %v105 = vld [vmem:[%s1 + $0x2b0] sm:$0xff]
  %v106 = vld [vmem:[%s1 + $0x2b8] sm:$0xff]
  %v107 = vld [vmem:[%s1 + $0x2c0] sm:$0xff]
  %v108 = vld [vmem:[%s1 + $0x2c8] sm:$0xff]
  %v109 = vld [vmem:[%s1 + $0x2d0] sm:$0xff]
  %v110 = vld [vmem:[%s1 + $0x2d8] sm:$0xff]
  %v111 = vld [vmem:[%s1 + $0x2e0] sm:$0xff]
  %v112 = vld [vmem:[%s1 + $0x2e8] sm:$0xff]
  %v113 = vld [vmem:[%s1 + $0x2f0] sm:$0xff]
  %v114 = vld [vmem:[%s1 + $0x2f8] sm:$0xff]
  %v115 = vld [vmem:[%s1 + $0x300] sm:$0xff]
  %v116 = vld [vmem:[%s1 + $0x308] sm:$0xff]
  %v117 = vld [vmem:[%s1 + $0x310] sm:$0xff]
  %v118 = vld [vmem:[%s1 + $0x318] sm:$0xff]
  %v119 = vld [vmem:[%s1 + $0x320] sm:$0xff]
  %v120 = vld [vmem:[%s1 + $0x328] sm:$0xff]
  %v121 = vld [vmem:[%s1 + $0x330] sm:$0xff]
  %v122 = vld [vmem:[%s1 + $0x338] sm:$0xff]
  %v123 = vld [vmem:[%s1 + $0x340] sm:$0xff]
  %v124 = vld [vmem:[%s1 + $0x348] sm:$0xff]
  %v125 = vld [vmem:[%s1 + $0x350] sm:$0xff]
  %v126 = vld [vmem:[%s1 + $0x358] sm:$0xff]
  %v127 = vld [vmem:[%s1 + $0x360] sm:$0xff]
  %v128 = vld [vmem:[%s1 + $0x368] sm:$0xff]
  %v129 = vld [vmem:[%s1 + $0x370] sm:$0xff]
  %v130 = vld [vmem:[%s1 + $0x378] sm:$0xff]
  %v131 = vld [vmem:[%s1 + $0x380] sm:$0xff]
  %v132 = vld [vmem:[%s1 + $0x388] sm:$0xff]
  %v133 = vld [vmem:[%s1 + $0x390] sm:$0xff]
  %v134 = vld [vmem:[%s1 + $0x398] sm:$0xff]
  %v135 = vld [vmem:[%s1 + $0x3a0] sm:$0xff]
  %v136 = vld [vmem:[%s1 + $0x3a8] sm:$0xff]
  %v137 = vld [vmem:[%s1 + $0x3b0] sm:$0xff]
  %v138 = vld [vmem:[%s1 + $0x3b8] sm:$0xff]
  %v139 = vld [vmem:[%s1 + $0x3c0] sm:$0xff]
  %v140 = vld [vmem:[%s1 + $0x3c8] sm:$0xff]
  %v141 = vld [vmem:[%s1 + $0x3d0] sm:$0xff]
  %v142 = vld [vmem:[%s1 + $0x3d8] sm:$0xff]
  %v143 = vld [vmem:[%s1 + $0x3e0] sm:$0xff]
  %v144 = vld [vmem:[%s1 + $0x3e8] sm:$0xff]
  %v145 = vld [vmem:[%s1 + $0x3f0] sm:$0xff]
  %v146 = vld [vmem:[%s1 + $0x3f8] sm:$0xff]
  %v147 = vld [vmem:[%s2] sm:$0xff]
  %v148 = vld [vmem:[%s2 + $0x8] sm:$0xff]
  %v149 = vld [vmem:[%s2 + $0x10] sm:$0xff]
  %v150 = vld [vmem:[%s2 + $0x18] sm:$0xff]
  %v151 = vld [vmem:[%s2 + $0x20] sm:$0xff]
  %v152 = vld [vmem:[%s2 + $0x28] sm:$0xff]
  %v153 = vld [vmem:[%s2 + $0x30] sm:$0xff]
  %v154 = vld [vmem:[%s2 + $0x38] sm:$0xff]
  %vm155 = vcmask 130048
  %v157 = vsel %vm155, %v19, 0
  %v160 = vsel %vm155, %v20, 0
  %v163 = vsel %vm155, %v21, 0
  %v166 = vsel %vm155, %v22, 0
  %v169 = vsel %vm155, %v23, 0
  %v172 = vsel %vm155, %v24, 0
  %v175 = vsel %vm155, %v25, 0
  %v178 = vsel %vm155, %v26, 0
  %v181 = vsel %vm155, %v27, 0
  %v184 = vsel %vm155, %v28, 0
  %v187 = vsel %vm155, %v29, 0
  %v190 = vsel %vm155, %v30, 0
  %v193 = vsel %vm155, %v31, 0
  %v196 = vsel %vm155, %v32, 0
  %v199 = vsel %vm155, %v33, 0
  %v202 = vsel %vm155, %v34, 0
  %v205 = vsel %vm155, %v35, 0
  %v208 = vsel %vm155, %v36, 0
  %v211 = vsel %vm155, %v37, 0
  %v214 = vsel %vm155, %v38, 0
  %v217 = vsel %vm155, %v39, 0
  %v220 = vsel %vm155, %v40, 0
  %v223 = vsel %vm155, %v41, 0
  %v226 = vsel %vm155, %v42, 0
  %v229 = vsel %vm155, %v43, 0
  %v232 = vsel %vm155, %v44, 0
  %v235 = vsel %vm155, %v45, 0
  %v238 = vsel %vm155, %v46, 0
  %v241 = vsel %vm155, %v47, 0
  %v244 = vsel %vm155, %v48, 0
  %v247 = vsel %vm155, %v49, 0
  %v250 = vsel %vm155, %v50, 0
  %v253 = vsel %vm155, %v51, 0
  %v256 = vsel %vm155, %v52, 0
  %v259 = vsel %vm155, %v53, 0
  %v262 = vsel %vm155, %v54, 0
  %v265 = vsel %vm155, %v55, 0
  %v268 = vsel %vm155, %v56, 0
  %v271 = vsel %vm155, %v57, 0
  %v274 = vsel %vm155, %v58, 0
  %v277 = vsel %vm155, %v59, 0
  %v280 = vsel %vm155, %v60, 0
  %v283 = vsel %vm155, %v61, 0
  %v286 = vsel %vm155, %v62, 0
  %v289 = vsel %vm155, %v63, 0
  %v292 = vsel %vm155, %v64, 0
  %v295 = vsel %vm155, %v65, 0
  %v298 = vsel %vm155, %v66, 0
  %v301 = vsel %vm155, %v67, 0
  %v304 = vsel %vm155, %v68, 0
  %v307 = vsel %vm155, %v69, 0
  %v310 = vsel %vm155, %v70, 0
  %v313 = vsel %vm155, %v71, 0
  %v316 = vsel %vm155, %v72, 0
  %v319 = vsel %vm155, %v73, 0
  %v322 = vsel %vm155, %v74, 0
  %v325 = vsel %vm155, %v75, 0
  %v328 = vsel %vm155, %v76, 0
  %v331 = vsel %vm155, %v77, 0
  %v334 = vsel %vm155, %v78, 0
  %v337 = vsel %vm155, %v79, 0
  %v340 = vsel %vm155, %v80, 0
  %v343 = vsel %vm155, %v81, 0
  %v346 = vsel %vm155, %v82, 0
  %v349 = vsel %vm155, %v83, 0
  %v352 = vsel %vm155, %v84, 0
  %v355 = vsel %vm155, %v85, 0
  %v358 = vsel %vm155, %v86, 0
  %v361 = vsel %vm155, %v87, 0
  %v364 = vsel %vm155, %v88, 0
  %v367 = vsel %vm155, %v89, 0
  %v370 = vsel %vm155, %v90, 0
  %v373 = vsel %vm155, %v91, 0
  %v376 = vsel %vm155, %v92, 0
  %v379 = vsel %vm155, %v93, 0
  %v382 = vsel %vm155, %v94, 0
  %v385 = vsel %vm155, %v95, 0
  %v388 = vsel %vm155, %v96, 0
  %v391 = vsel %vm155, %v97, 0
  %v394 = vsel %vm155, %v98, 0
  %v397 = vsel %vm155, %v99, 0
  %v400 = vsel %vm155, %v100, 0
  %v403 = vsel %vm155, %v101, 0
  %v406 = vsel %vm155, %v102, 0
  %v409 = vsel %vm155, %v103, 0
  %v412 = vsel %vm155, %v104, 0
  %v415 = vsel %vm155, %v105, 0
  %v418 = vsel %vm155, %v106, 0
  %v421 = vsel %vm155, %v107, 0
  %v424 = vsel %vm155, %v108, 0
  %v427 = vsel %vm155, %v109, 0
  %v430 = vsel %vm155, %v110, 0
  %v433 = vsel %vm155, %v111, 0
  %v436 = vsel %vm155, %v112, 0
  %v439 = vsel %vm155, %v113, 0
  %v442 = vsel %vm155, %v114, 0
  %v445 = vsel %vm155, %v115, 0
  %v448 = vsel %vm155, %v116, 0
  %v451 = vsel %vm155, %v117, 0
  %v454 = vsel %vm155, %v118, 0
  %v457 = vsel %vm155, %v119, 0
  %v460 = vsel %vm155, %v120, 0
  %v463 = vsel %vm155, %v121, 0
  %v466 = vsel %vm155, %v122, 0
  %v469 = vsel %vm155, %v123, 0
  %v472 = vsel %vm155, %v124, 0
  %v475 = vsel %vm155, %v125, 0
  %v478 = vsel %vm155, %v126, 0
  %v481 = vsel %vm155, %v127, 0
  %v484 = vsel %vm155, %v128, 0
  %v487 = vsel %vm155, %v129, 0
  %v490 = vsel %vm155, %v130, 0
  %v493 = vsel %vm155, %v131, 0
  %v496 = vsel %vm155, %v132, 0
  %v499 = vsel %vm155, %v133, 0
  %v502 = vsel %vm155, %v134, 0
  %v505 = vsel %vm155, %v135, 0
  %v508 = vsel %vm155, %v136, 0
  %v511 = vsel %vm155, %v137, 0
  %v514 = vsel %vm155, %v138, 0
  %v517 = vsel %vm155, %v139, 0
  %v520 = vsel %vm155, %v140, 0
  %v523 = vsel %vm155, %v141, 0
  %v526 = vsel %vm155, %v142, 0
  %v529 = vsel %vm155, %v143, 0
  %v532 = vsel %vm155, %v144, 0
  %v535 = vsel %vm155, %v145, 0
  %v538 = vsel %vm155, %v146, 0
  %540 = vmatprep.subr.mxu0 0.0
  %541 = vmatpush1.msra.mxu0 %v17
  %542 = vmatprep.subr.mxu0 0.0
  %543 = vmatpush1.msra.mxu0 %v18
  %544 = vmatprep.subr.mxu0 0.0
  %545 = vmatpush1.msra.mxu0 0.0
  %546 = vmatprep.subr.mxu0 0.0
  %547 = vmatpush1.msra.mxu0 0.0
  %548 = vmatprep.subr.mxu0 0.0
  %549 = vmatpush1.msra.mxu0 0.0
  %550 = vmatprep.subr.mxu0 0.0
  %551 = vmatpush1.msra.mxu0 0.0
  %552 = vmatprep.subr.mxu0 0.0
  %553 = vmatpush1.msra.mxu0 0.0
  %554 = vmatprep.subr.mxu0 0.0
  %555 = vmatpush1.msra.mxu0 0.0
  %556 = vmatprep.subr.mxu0 0.0
  %557 = vmatpush1.msra.mxu0 0.0
  %558 = vmatprep.subr.mxu0 0.0
  %559 = vmatpush1.msra.mxu0 0.0
  %560 = vmatprep.subr.mxu0 0.0
  %561 = vmatpush1.msra.mxu0 0.0
  %562 = vmatprep.subr.mxu0 0.0
  %563 = vmatpush1.msra.mxu0 0.0
  %564 = vmatprep.subr.mxu0 0.0
  %565 = vmatpush1.msra.mxu0 0.0
  %566 = vmatprep.subr.mxu0 0.0
  %567 = vmatpush1.msra.mxu0 0.0
  %568 = vmatprep.subr.mxu0 0.0
  %569 = vmatpush1.msra.mxu0 0.0
  %570 = vmatprep.subr.mxu0 0.0
  %571 = vmatpush1.msra.mxu0 0.0
  %572 = vmatprep.subr.mxu0 0.0
  %573 = vmatpush1.msra.mxu0 0.0
  %574 = vmatprep.subr.mxu0 0.0
  %575 = vmatpush1.msra.mxu0 0.0
  %576 = vmatprep.subr.mxu0 0.0
  %577 = vmatpush1.msra.mxu0 0.0
  %578 = vmatprep.subr.mxu0 0.0
  %579 = vmatpush1.msra.mxu0 0.0
  %580 = vmatprep.subr.mxu0 0.0
  %581 = vmatpush1.msra.mxu0 0.0
  %582 = vmatprep.subr.mxu0 0.0
  %583 = vmatpush1.msra.mxu0 0.0
  %584 = vmatprep.subr.mxu0 0.0
  %585 = vmatpush1.msra.mxu0 0.0
  %586 = vmatprep.subr.mxu0 0.0
  %587 = vmatpush1.msra.mxu0 0.0
  %588 = vmatprep.subr.mxu0 0.0
  %589 = vmatpush1.msra.mxu0 0.0
  %590 = vmatprep.subr.mxu0 0.0
  %591 = vmatpush1.msra.mxu0 0.0
  %592 = vmatprep.subr.mxu0 0.0
  %593 = vmatpush1.msra.mxu0 0.0
  %594 = vmatprep.subr.mxu0 0.0
  %595 = vmatpush1.msra.mxu0 0.0
  %596 = vmatprep.subr.mxu0 0.0
  %597 = vmatpush1.msra.mxu0 0.0
  %598 = vmatprep.subr.mxu0 0.0
  %599 = vmatpush1.msra.mxu0 0.0
  %600 = vmatprep.subr.mxu0 0.0
  %601 = vmatpush1.msra.mxu0 0.0
  %602 = vmatprep.subr.mxu0 0.0
  %603 = vmatpush1.msra.mxu0 0.0
  %604 = vmatprep.mubr.f32.mxu0 0.0
  %605 = vmatmul.mubr.f32.gmra.mrb[0].mxu0 %v157
  %v606 = vpop.f32.mrb[0].mxu0
  %v607 = vadd.f32 0.0, %v606
  %v608 = vpop.f32.mrb[0].mxu0
  %609 = vmatprep.mubr.f32.mxu0 0.0
  %610 = vmatmul.mubr.f32.gmra.mrb[0].mxu0 %v160
  %v611 = vpop.f32.mrb[0].mxu0
  %v612 = vadd.f32 0.0, %v611
  %v613 = vpop.f32.mrb[0].mxu0
  %614 = vmatprep.mubr.f32.mxu0 0.0
  %615 = vmatmul.mubr.f32.gmra.mrb[0].mxu0 %v163
  %v616 = vpop.f32.mrb[0].mxu0
  %v617 = vadd.f32 0.0, %v616
  %v618 = vpop.f32.mrb[0].mxu0
  %619 = vmatprep.mubr.f32.mxu0 0.0
  %620 = vmatmul.mubr.f32.gmra.mrb[0].mxu0 %v166
  %v621 = vpop.f32.mrb[0].mxu0
  %v622 = vadd.f32 0.0, %v621
  %v623 = vpop.f32.mrb[0].mxu0
  %624 = vmatprep.mubr.f32.mxu0 0.0
  %625 = vmatmul.mubr.f32.gmra.mrb[0].mxu0 %v169
  %v626 = vpop.f32.mrb[0].mxu0
  %v627 = vadd.f32 0.0, %v626
  %v628 = vpop.f32.mrb[0].mxu0
  %629 = vmatprep.mubr.f32.mxu0 0.0
  %630 = vmatmul.mubr.f32.gmra.mrb[0].mxu0 %v172
  %v631 = vpop.f32.mrb[0].mxu0
  %v632 = vadd.f32 0.0, %v631
  %v633 = vpop.f32.mrb[0].mxu0
  %634 = vmatprep.mubr.f32.mxu0 0.0
  %635 = vmatmul.mubr.f32.gmra.mrb[0].mxu0 %v175
  %v636 = vpop.f32.mrb[0].mxu0
  %v637 = vadd.f32 0.0, %v636
  %v638 = vpop.f32.mrb[0].mxu0
  %639 = vmatprep.mubr.f32.mxu0 0.0
  %640 = vmatmul.mubr.f32.gmra.mrb[0].mxu0 %v178
  %v641 = vpop.f32.mrb[0].mxu0
  %v642 = vadd.f32 0.0, %v641
  %v643 = vpop.f32.mrb[0].mxu0
  %644 = vmatprep.mubr.f32.mxu0 0.0
  %645 = vmatmul.mubr.f32.gmra.mrb[0].mxu0 %v181
  %v646 = vpop.f32.mrb[0].mxu0
  %v647 = vadd.f32 0.0, %v646
  %v648 = vpop.f32.mrb[0].mxu0
  %649 = vmatprep.mubr.f32.mxu0 0.0
  %650 = vmatmul.mubr.f32.gmra.mrb[0].mxu0 %v184
  %v651 = vpop.f32.mrb[0].mxu0
  %v652 = vadd.f32 0.0, %v651
  %v653 = vpop.f32.mrb[0].mxu0
  %654 = vmatprep.mubr.f32.mxu0 0.0
  %655 = vmatmul.mubr.f32.gmra.mrb[0].mxu0 %v187
  %v656 = vpop.f32.mrb[0].mxu0
  %v657 = vadd.f32 0.0, %v656
  %v658 = vpop.f32.mrb[0].mxu0
  %659 = vmatprep.mubr.f32.mxu0 0.0
  %660 = vmatmul.mubr.f32.gmra.mrb[0].mxu0 %v190
  %v661 = vpop.f32.mrb[0].mxu0
  %v662 = vadd.f32 0.0, %v661
  %v663 = vpop.f32.mrb[0].mxu0
  %664 = vmatprep.mubr.f32.mxu0 0.0
  %665 = vmatmul.mubr.f32.gmra.mrb[0].mxu0 %v193
  %v666 = vpop.f32.mrb[0].mxu0
  %v667 = vadd.f32 0.0, %v666
  %v668 = vpop.f32.mrb[0].mxu0
  %669 = vmatprep.mubr.f32.mxu0 0.0
  %670 = vmatmul.mubr.f32.gmra.mrb[0].mxu0 %v196
  %v671 = vpop.f32.mrb[0].mxu0
  %v672 = vadd.f32 0.0, %v671
  %v673 = vpop.f32.mrb[0].mxu0
  %674 = vmatprep.mubr.f32.mxu0 0.0
  %675 = vmatmul.mubr.f32.gmra.mrb[0].mxu0 %v199
  %v676 = vpop.f32.mrb[0].mxu0
  %v677 = vadd.f32 0.0, %v676
  %v678 = vpop.f32.mrb[0].mxu0
  %679 = vmatprep.mubr.f32.mxu0 0.0
  %680 = vmatmul.mubr.f32.gmra.mrb[0].mxu0 %v202
  %v681 = vpop.f32.mrb[0].mxu0
  %v682 = vadd.f32 0.0, %v681
  %v683 = vpop.f32.mrb[0].mxu0
  %684 = vmatprep.mubr.f32.mxu0 0.0
  %685 = vmatmul.mubr.f32.gmra.mrb[0].mxu0 %v205
  %v686 = vpop.f32.mrb[0].mxu0
  %v687 = vadd.f32 0.0, %v686
  %v688 = vpop.f32.mrb[0].mxu0
  %689 = vmatprep.mubr.f32.mxu0 0.0
  %690 = vmatmul.mubr.f32.gmra.mrb[0].mxu0 %v208
  %v691 = vpop.f32.mrb[0].mxu0
  %v692 = vadd.f32 0.0, %v691
  %v693 = vpop.f32.mrb[0].mxu0
  %694 = vmatprep.mubr.f32.mxu0 0.0
  %695 = vmatmul.mubr.f32.gmra.mrb[0].mxu0 %v211
  %v696 = vpop.f32.mrb[0].mxu0
  %v697 = vadd.f32 0.0, %v696
  %v698 = vpop.f32.mrb[0].mxu0
  %699 = vmatprep.mubr.f32.mxu0 0.0
  %700 = vmatmul.mubr.f32.gmra.mrb[0].mxu0 %v214
  %v701 = vpop.f32.mrb[0].mxu0
  %v702 = vadd.f32 0.0, %v701
  %v703 = vpop.f32.mrb[0].mxu0
  %704 = vmatprep.mubr.f32.mxu0 0.0
  %705 = vmatmul.mubr.f32.gmra.mrb[0].mxu0 %v217
  %v706 = vpop.f32.mrb[0].mxu0
  %v707 = vadd.f32 0.0, %v706
  %v708 = vpop.f32.mrb[0].mxu0
  %709 = vmatprep.mubr.f32.mxu0 0.0
  %710 = vmatmul.mubr.f32.gmra.mrb[0].mxu0 %v220
  %v711 = vpop.f32.mrb[0].mxu0
  %v712 = vadd.f32 0.0, %v711
  %v713 = vpop.f32.mrb[0].mxu0
  %714 = vmatprep.mubr.f32.mxu0 0.0
  %715 = vmatmul.mubr.f32.gmra.mrb[0].mxu0 %v223
  %v716 = vpop.f32.mrb[0].mxu0
  %v717 = vadd.f32 0.0, %v716
  %v718 = vpop.f32.mrb[0].mxu0
  %719 = vmatprep.mubr.f32.mxu0 0.0
  %720 = vmatmul.mubr.f32.gmra.mrb[0].mxu0 %v226
  %v721 = vpop.f32.mrb[0].mxu0
  %v722 = vadd.f32 0.0, %v721
  %v723 = vpop.f32.mrb[0].mxu0
  %724 = vmatprep.mubr.f32.mxu0 0.0
  %725 = vmatmul.mubr.f32.gmra.mrb[0].mxu0 %v229
  %v726 = vpop.f32.mrb[0].mxu0
  %v727 = vadd.f32 0.0, %v726
  %v728 = vpop.f32.mrb[0].mxu0
  %729 = vmatprep.mubr.f32.mxu0 0.0
  %730 = vmatmul.mubr.f32.gmra.mrb[0].mxu0 %v232
  %v731 = vpop.f32.mrb[0].mxu0
  %v732 = vadd.f32 0.0, %v731
  %v733 = vpop.f32.mrb[0].mxu0
  %734 = vmatprep.mubr.f32.mxu0 0.0
  %735 = vmatmul.mubr.f32.gmra.mrb[0].mxu0 %v235
  %v736 = vpop.f32.mrb[0].mxu0
  %v737 = vadd.f32 0.0, %v736
  %v738 = vpop.f32.mrb[0].mxu0
  %739 = vmatprep.mubr.f32.mxu0 0.0
  %740 = vmatmul.mubr.f32.gmra.mrb[0].mxu0 %v238
  %v741 = vpop.f32.mrb[0].mxu0
  %v742 = vadd.f32 0.0, %v741
  %v743 = vpop.f32.mrb[0].mxu0
  %744 = vmatprep.mubr.f32.mxu0 0.0
  %745 = vmatmul.mubr.f32.gmra.mrb[0].mxu0 %v241
  %v746 = vpop.f32.mrb[0].mxu0
  %v747 = vadd.f32 0.0, %v746
  %v748 = vpop.f32.mrb[0].mxu0
  %749 = vmatprep.mubr.f32.mxu0 0.0
  %750 = vmatmul.mubr.f32.gmra.mrb[0].mxu0 %v244
  %v751 = vpop.f32.mrb[0].mxu0
  %v752 = vadd.f32 0.0, %v751
  %v753 = vpop.f32.mrb[0].mxu0
  %754 = vmatprep.mubr.f32.mxu0 0.0
  %755 = vmatmul.mubr.f32.gmra.mrb[0].mxu0 %v247
  %v756 = vpop.f32.mrb[0].mxu0
  %v757 = vadd.f32 0.0, %v756
  %v758 = vpop.f32.mrb[0].mxu0
  %759 = vmatprep.mubr.f32.mxu0 0.0
  %760 = vmatmul.mubr.f32.gmra.mrb[0].mxu0 %v250
  %v761 = vpop.f32.mrb[0].mxu0
  %v762 = vadd.f32 0.0, %v761
  %v763 = vpop.f32.mrb[0].mxu0
  %764 = vmatprep.mubr.f32.mxu0 0.0
  %765 = vmatmul.mubr.f32.gmra.mrb[0].mxu0 %v253
  %v766 = vpop.f32.mrb[0].mxu0
  %v767 = vadd.f32 0.0, %v766
  %v768 = vpop.f32.mrb[0].mxu0
  %769 = vmatprep.mubr.f32.mxu0 0.0
  %770 = vmatmul.mubr.f32.gmra.mrb[0].mxu0 %v256
  %v771 = vpop.f32.mrb[0].mxu0
  %v772 = vadd.f32 0.0, %v771
  %v773 = vpop.f32.mrb[0].mxu0
  %774 = vmatprep.mubr.f32.mxu0 0.0
  %775 = vmatmul.mubr.f32.gmra.mrb[0].mxu0 %v259
  %v776 = vpop.f32.mrb[0].mxu0
  %v777 = vadd.f32 0.0, %v776
  %v778 = vpop.f32.mrb[0].mxu0
  %779 = vmatprep.mubr.f32.mxu0 0.0
  %780 = vmatmul.mubr.f32.gmra.mrb[0].mxu0 %v262
  %v781 = vpop.f32.mrb[0].mxu0
  %v782 = vadd.f32 0.0, %v781
  %v783 = vpop.f32.mrb[0].mxu0
  %784 = vmatprep.mubr.f32.mxu0 0.0
  %785 = vmatmul.mubr.f32.gmra.mrb[0].mxu0 %v265
  %v786 = vpop.f32.mrb[0].mxu0
  %v787 = vadd.f32 0.0, %v786
  %v788 = vpop.f32.mrb[0].mxu0
  %789 = vmatprep.mubr.f32.mxu0 0.0
  %790 = vmatmul.mubr.f32.gmra.mrb[0].mxu0 %v268
  %v791 = vpop.f32.mrb[0].mxu0
  %v792 = vadd.f32 0.0, %v791
  %v793 = vpop.f32.mrb[0].mxu0
  %794 = vmatprep.mubr.f32.mxu0 0.0
  %795 = vmatmul.mubr.f32.gmra.mrb[0].mxu0 %v271
  %v796 = vpop.f32.mrb[0].mxu0
  %v797 = vadd.f32 0.0, %v796
  %v798 = vpop.f32.mrb[0].mxu0
  %799 = vmatprep.mubr.f32.mxu0 0.0
  %800 = vmatmul.mubr.f32.gmra.mrb[0].mxu0 %v274
  %v801 = vpop.f32.mrb[0].mxu0
  %v802 = vadd.f32 0.0, %v801
  %v803 = vpop.f32.mrb[0].mxu0
  %804 = vmatprep.mubr.f32.mxu0 0.0
  %805 = vmatmul.mubr.f32.gmra.mrb[0].mxu0 %v277
  %v806 = vpop.f32.mrb[0].mxu0
  %v807 = vadd.f32 0.0, %v806
  %v808 = vpop.f32.mrb[0].mxu0
  %809 = vmatprep.mubr.f32.mxu0 0.0
  %810 = vmatmul.mubr.f32.gmra.mrb[0].mxu0 %v280
  %v811 = vpop.f32.mrb[0].mxu0
  %v812 = vadd.f32 0.0, %v811
  %v813 = vpop.f32.mrb[0].mxu0
  %814 = vmatprep.mubr.f32.mxu0 0.0
  %815 = vmatmul.mubr.f32.gmra.mrb[0].mxu0 %v283
  %v816 = vpop.f32.mrb[0].mxu0
  %v817 = vadd.f32 0.0, %v816
  %v818 = vpop.f32.mrb[0].mxu0
  %819 = vmatprep.mubr.f32.mxu0 0.0
  %820 = vmatmul.mubr.f32.gmra.mrb[0].mxu0 %v286
  %v821 = vpop.f32.mrb[0].mxu0
  %v822 = vadd.f32 0.0, %v821
  %v823 = vpop.f32.mrb[0].mxu0
  %824 = vmatprep.mubr.f32.mxu0 0.0
  %825 = vmatmul.mubr.f32.gmra.mrb[0].mxu0 %v289
  %v826 = vpop.f32.mrb[0].mxu0
  %v827 = vadd.f32 0.0, %v826
  %v828 = vpop.f32.mrb[0].mxu0
  %829 = vmatprep.mubr.f32.mxu0 0.0
  %830 = vmatmul.mubr.f32.gmra.mrb[0].mxu0 %v292
  %v831 = vpop.f32.mrb[0].mxu0
  %v832 = vadd.f32 0.0, %v831
  %v833 = vpop.f32.mrb[0].mxu0
  %834 = vmatprep.mubr.f32.mxu0 0.0
  %835 = vmatmul.mubr.f32.gmra.mrb[0].mxu0 %v295
  %v836 = vpop.f32.mrb[0].mxu0
  %v837 = vadd.f32 0.0, %v836
  %v838 = vpop.f32.mrb[0].mxu0
  %839 = vmatprep.mubr.f32.mxu0 0.0
  %840 = vmatmul.mubr.f32.gmra.mrb[0].mxu0 %v298
  %v841 = vpop.f32.mrb[0].mxu0
  %v842 = vadd.f32 0.0, %v841
  %v843 = vpop.f32.mrb[0].mxu0
  %844 = vmatprep.mubr.f32.mxu0 0.0
  %845 = vmatmul.mubr.f32.gmra.mrb[0].mxu0 %v301
  %v846 = vpop.f32.mrb[0].mxu0
  %v847 = vadd.f32 0.0, %v846
  %v848 = vpop.f32.mrb[0].mxu0
  %849 = vmatprep.mubr.f32.mxu0 0.0
  %850 = vmatmul.mubr.f32.gmra.mrb[0].mxu0 %v304
  %v851 = vpop.f32.mrb[0].mxu0
  %v852 = vadd.f32 0.0, %v851
  %v853 = vpop.f32.mrb[0].mxu0
  %854 = vmatprep.mubr.f32.mxu0 0.0
  %855 = vmatmul.mubr.f32.gmra.mrb[0].mxu0 %v307
  %v856 = vpop.f32.mrb[0].mxu0
  %v857 = vadd.f32 0.0, %v856
  %v858 = vpop.f32.mrb[0].mxu0
  %859 = vmatprep.mubr.f32.mxu0 0.0
  %860 = vmatmul.mubr.f32.gmra.mrb[0].mxu0 %v310
  %v861 = vpop.f32.mrb[0].mxu0
  %v862 = vadd.f32 0.0, %v861
  %v863 = vpop.f32.mrb[0].mxu0
  %864 = vmatprep.mubr.f32.mxu0 0.0
  %865 = vmatmul.mubr.f32.gmra.mrb[0].mxu0 %v313
  %v866 = vpop.f32.mrb[0].mxu0
  %v867 = vadd.f32 0.0, %v866
  %v868 = vpop.f32.mrb[0].mxu0
  %869 = vmatprep.mubr.f32.mxu0 0.0
  %870 = vmatmul.mubr.f32.gmra.mrb[0].mxu0 %v316
  %v871 = vpop.f32.mrb[0].mxu0
  %v872 = vadd.f32 0.0, %v871
  %v873 = vpop.f32.mrb[0].mxu0
  %874 = vmatprep.mubr.f32.mxu0 0.0
  %875 = vmatmul.mubr.f32.gmra.mrb[0].mxu0 %v319
  %v876 = vpop.f32.mrb[0].mxu0
  %v877 = vadd.f32 0.0, %v876
  %v878 = vpop.f32.mrb[0].mxu0
  %879 = vmatprep.mubr.f32.mxu0 0.0
  %880 = vmatmul.mubr.f32.gmra.mrb[0].mxu0 %v322
  %v881 = vpop.f32.mrb[0].mxu0
  %v882 = vadd.f32 0.0, %v881
  %v883 = vpop.f32.mrb[0].mxu0
  %884 = vmatprep.mubr.f32.mxu0 0.0
  %885 = vmatmul.mubr.f32.gmra.mrb[0].mxu0 %v325
  %v886 = vpop.f32.mrb[0].mxu0
  %v887 = vadd.f32 0.0, %v886
  %v888 = vpop.f32.mrb[0].mxu0
  %889 = vmatprep.mubr.f32.mxu0 0.0
  %890 = vmatmul.mubr.f32.gmra.mrb[0].mxu0 %v328
  %v891 = vpop.f32.mrb[0].mxu0
  %v892 = vadd.f32 0.0, %v891
  %v893 = vpop.f32.mrb[0].mxu0
  %894 = vmatprep.mubr.f32.mxu0 0.0
  %895 = vmatmul.mubr.f32.gmra.mrb[0].mxu0 %v331
  %v896 = vpop.f32.mrb[0].mxu0
  %v897 = vadd.f32 0.0, %v896
  %v898 = vpop.f32.mrb[0].mxu0
  %899 = vmatprep.mubr.f32.mxu0 0.0
  %900 = vmatmul.mubr.f32.gmra.mrb[0].mxu0 %v334
  %v901 = vpop.f32.mrb[0].mxu0
  %v902 = vadd.f32 0.0, %v901
  %v903 = vpop.f32.mrb[0].mxu0
  %904 = vmatprep.mubr.f32.mxu0 0.0
  %905 = vmatmul.mubr.f32.gmra.mrb[0].mxu0 %v337
  %v906 = vpop.f32.mrb[0].mxu0
  %v907 = vadd.f32 0.0, %v906
  %v908 = vpop.f32.mrb[0].mxu0
  %909 = vmatprep.mubr.f32.mxu0 0.0
  %910 = vmatmul.mubr.f32.gmra.mrb[0].mxu0 %v340
  %v911 = vpop.f32.mrb[0].mxu0
  %v912 = vadd.f32 0.0, %v911
  %v913 = vpop.f32.mrb[0].mxu0
  %914 = vmatprep.mubr.f32.mxu0 0.0
  %915 = vmatmul.mubr.f32.gmra.mrb[0].mxu0 %v343
  %v916 = vpop.f32.mrb[0].mxu0
  %v917 = vadd.f32 0.0, %v916
  %v918 = vpop.f32.mrb[0].mxu0
  %919 = vmatprep.mubr.f32.mxu0 0.0
  %920 = vmatmul.mubr.f32.gmra.mrb[0].mxu0 %v346
  %v921 = vpop.f32.mrb[0].mxu0
  %v922 = vadd.f32 0.0, %v921
  %v923 = vpop.f32.mrb[0].mxu0
  %924 = vmatprep.mubr.f32.mxu0 0.0
  %925 = vmatmul.mubr.f32.gmra.mrb[0].mxu0 %v349
  %v926 = vpop.f32.mrb[0].mxu0
  %v927 = vadd.f32 0.0, %v926
  %v928 = vpop.f32.mrb[0].mxu0
  %929 = vmatprep.mubr.f32.mxu0 0.0
  %930 = vmatmul.mubr.f32.gmra.mrb[0].mxu0 %v352
  %v931 = vpop.f32.mrb[0].mxu0
  %v932 = vadd.f32 0.0, %v931
  %v933 = vpop.f32.mrb[0].mxu0
  %934 = vmatprep.mubr.f32.mxu0 0.0
  %935 = vmatmul.mubr.f32.gmra.mrb[0].mxu0 %v355
  %v936 = vpop.f32.mrb[0].mxu0
  %v937 = vadd.f32 0.0, %v936
  %v938 = vpop.f32.mrb[0].mxu0
  %939 = vmatprep.mubr.f32.mxu0 0.0
  %940 = vmatmul.mubr.f32.gmra.mrb[0].mxu0 %v358
  %v941 = vpop.f32.mrb[0].mxu0
  %v942 = vadd.f32 0.0, %v941
  %v943 = vpop.f32.mrb[0].mxu0
  %944 = vmatprep.mubr.f32.mxu0 0.0
  %945 = vmatmul.mubr.f32.gmra.mrb[0].mxu0 %v361
  %v946 = vpop.f32.mrb[0].mxu0
  %v947 = vadd.f32 0.0, %v946
  %v948 = vpop.f32.mrb[0].mxu0
  %949 = vmatprep.mubr.f32.mxu0 0.0
  %950 = vmatmul.mubr.f32.gmra.mrb[0].mxu0 %v364
  %v951 = vpop.f32.mrb[0].mxu0
  %v952 = vadd.f32 0.0, %v951
  %v953 = vpop.f32.mrb[0].mxu0
  %954 = vmatprep.mubr.f32.mxu0 0.0
  %955 = vmatmul.mubr.f32.gmra.mrb[0].mxu0 %v367
  %v956 = vpop.f32.mrb[0].mxu0
  %v957 = vadd.f32 0.0, %v956
  %v958 = vpop.f32.mrb[0].mxu0
  %959 = vmatprep.mubr.f32.mxu0 0.0
  %960 = vmatmul.mubr.f32.gmra.mrb[0].mxu0 %v370
  %v961 = vpop.f32.mrb[0].mxu0
  %v962 = vadd.f32 0.0, %v961
  %v963 = vpop.f32.mrb[0].mxu0
  %964 = vmatprep.mubr.f32.mxu0 0.0
  %965 = vmatmul.mubr.f32.gmra.mrb[0].mxu0 %v373
  %v966 = vpop.f32.mrb[0].mxu0
  %v967 = vadd.f32 0.0, %v966
  %v968 = vpop.f32.mrb[0].mxu0
  %969 = vmatprep.mubr.f32.mxu0 0.0
  %970 = vmatmul.mubr.f32.gmra.mrb[0].mxu0 %v376
  %v971 = vpop.f32.mrb[0].mxu0
  %v972 = vadd.f32 0.0, %v971
  %v973 = vpop.f32.mrb[0].mxu0
  %974 = vmatprep.mubr.f32.mxu0 0.0
  %975 = vmatmul.mubr.f32.gmra.mrb[0].mxu0 %v379
  %v976 = vpop.f32.mrb[0].mxu0
  %v977 = vadd.f32 0.0, %v976
  %v978 = vpop.f32.mrb[0].mxu0
  %979 = vmatprep.mubr.f32.mxu0 0.0
  %980 = vmatmul.mubr.f32.gmra.mrb[0].mxu0 %v382
  %v981 = vpop.f32.mrb[0].mxu0
  %v982 = vadd.f32 0.0, %v981
  %v983 = vpop.f32.mrb[0].mxu0
  %984 = vmatprep.mubr.f32.mxu0 0.0
  %985 = vmatmul.mubr.f32.gmra.mrb[0].mxu0 %v385
  %v986 = vpop.f32.mrb[0].mxu0
  %v987 = vadd.f32 0.0, %v986
  %v988 = vpop.f32.mrb[0].mxu0
  %989 = vmatprep.mubr.f32.mxu0 0.0
  %990 = vmatmul.mubr.f32.gmra.mrb[0].mxu0 %v388
  %v991 = vpop.f32.mrb[0].mxu0
  %v992 = vadd.f32 0.0, %v991
  %v993 = vpop.f32.mrb[0].mxu0
  %994 = vmatprep.mubr.f32.mxu0 0.0
  %995 = vmatmul.mubr.f32.gmra.mrb[0].mxu0 %v391
  %v996 = vpop.f32.mrb[0].mxu0
  %v997 = vadd.f32 0.0, %v996
  %v998 = vpop.f32.mrb[0].mxu0
  %999 = vmatprep.mubr.f32.mxu0 0.0
  %1000 = vmatmul.mubr.f32.gmra.mrb[0].mxu0 %v394
  %v1001 = vpop.f32.mrb[0].mxu0
  %v1002 = vadd.f32 0.0, %v1001
  %v1003 = vpop.f32.mrb[0].mxu0
  %1004 = vmatprep.mubr.f32.mxu0 0.0
  %1005 = vmatmul.mubr.f32.gmra.mrb[0].mxu0 %v397
  %v1006 = vpop.f32.mrb[0].mxu0
  %v1007 = vadd.f32 0.0, %v1006
  %v1008 = vpop.f32.mrb[0].mxu0
  %1009 = vmatprep.mubr.f32.mxu0 0.0
  %1010 = vmatmul.mubr.f32.gmra.mrb[0].mxu0 %v400
  %v1011 = vpop.f32.mrb[0].mxu0
  %v1012 = vadd.f32 0.0, %v1011
  %v1013 = vpop.f32.mrb[0].mxu0
  %1014 = vmatprep.mubr.f32.mxu0 0.0
  %1015 = vmatmul.mubr.f32.gmra.mrb[0].mxu0 %v403
  %v1016 = vpop.f32.mrb[0].mxu0
  %v1017 = vadd.f32 0.0, %v1016
  %v1018 = vpop.f32.mrb[0].mxu0
  %1019 = vmatprep.mubr.f32.mxu0 0.0
  %1020 = vmatmul.mubr.f32.gmra.mrb[0].mxu0 %v406
  %v1021 = vpop.f32.mrb[0].mxu0
  %v1022 = vadd.f32 0.0, %v1021
  %v1023 = vpop.f32.mrb[0].mxu0
  %1024 = vmatprep.mubr.f32.mxu0 0.0
  %1025 = vmatmul.mubr.f32.gmra.mrb[0].mxu0 %v409
  %v1026 = vpop.f32.mrb[0].mxu0
  %v1027 = vadd.f32 0.0, %v1026
  %v1028 = vpop.f32.mrb[0].mxu0
  %1029 = vmatprep.mubr.f32.mxu0 0.0
  %1030 = vmatmul.mubr.f32.gmra.mrb[0].mxu0 %v412
  %v1031 = vpop.f32.mrb[0].mxu0
  %v1032 = vadd.f32 0.0, %v1031
  %v1033 = vpop.f32.mrb[0].mxu0
  %1034 = vmatprep.mubr.f32.mxu0 0.0
  %1035 = vmatmul.mubr.f32.gmra.mrb[0].mxu0 %v415
  %v1036 = vpop.f32.mrb[0].mxu0
  %v1037 = vadd.f32 0.0, %v1036
  %v1038 = vpop.f32.mrb[0].mxu0
  %1039 = vmatprep.mubr.f32.mxu0 0.0
  %1040 = vmatmul.mubr.f32.gmra.mrb[0].mxu0 %v418
  %v1041 = vpop.f32.mrb[0].mxu0
  %v1042 = vadd.f32 0.0, %v1041
  %v1043 = vpop.f32.mrb[0].mxu0
  %1044 = vmatprep.mubr.f32.mxu0 0.0
  %1045 = vmatmul.mubr.f32.gmra.mrb[0].mxu0 %v421
  %v1046 = vpop.f32.mrb[0].mxu0
  %v1047 = vadd.f32 0.0, %v1046
  %v1048 = vpop.f32.mrb[0].mxu0
  %1049 = vmatprep.mubr.f32.mxu0 0.0
  %1050 = vmatmul.mubr.f32.gmra.mrb[0].mxu0 %v424
  %v1051 = vpop.f32.mrb[0].mxu0
  %v1052 = vadd.f32 0.0, %v1051
  %v1053 = vpop.f32.mrb[0].mxu0
  %1054 = vmatprep.mubr.f32.mxu0 0.0
  %1055 = vmatmul.mubr.f32.gmra.mrb[0].mxu0 %v427
  %v1056 = vpop.f32.mrb[0].mxu0
  %v1057 = vadd.f32 0.0, %v1056
  %v1058 = vpop.f32.mrb[0].mxu0
  %1059 = vmatprep.mubr.f32.mxu0 0.0
  %1060 = vmatmul.mubr.f32.gmra.mrb[0].mxu0 %v430
  %v1061 = vpop.f32.mrb[0].mxu0
  %v1062 = vadd.f32 0.0, %v1061
  %v1063 = vpop.f32.mrb[0].mxu0
  %1064 = vmatprep.mubr.f32.mxu0 0.0
  %1065 = vmatmul.mubr.f32.gmra.mrb[0].mxu0 %v433
  %v1066 = vpop.f32.mrb[0].mxu0
  %v1067 = vadd.f32 0.0, %v1066
  %v1068 = vpop.f32.mrb[0].mxu0
  %1069 = vmatprep.mubr.f32.mxu0 0.0
  %1070 = vmatmul.mubr.f32.gmra.mrb[0].mxu0 %v436
  %v1071 = vpop.f32.mrb[0].mxu0
  %v1072 = vadd.f32 0.0, %v1071
  %v1073 = vpop.f32.mrb[0].mxu0
  %1074 = vmatprep.mubr.f32.mxu0 0.0
  %1075 = vmatmul.mubr.f32.gmra.mrb[0].mxu0 %v439
  %v1076 = vpop.f32.mrb[0].mxu0
  %v1077 = vadd.f32 0.0, %v1076
  %v1078 = vpop.f32.mrb[0].mxu0
  %1079 = vmatprep.mubr.f32.mxu0 0.0
  %1080 = vmatmul.mubr.f32.gmra.mrb[0].mxu0 %v442
  %v1081 = vpop.f32.mrb[0].mxu0
  %v1082 = vadd.f32 0.0, %v1081
  %v1083 = vpop.f32.mrb[0].mxu0
  %1084 = vmatprep.mubr.f32.mxu0 0.0
  %1085 = vmatmul.mubr.f32.gmra.mrb[0].mxu0 %v445
  %v1086 = vpop.f32.mrb[0].mxu0
  %v1087 = vadd.f32 0.0, %v1086
  %v1088 = vpop.f32.mrb[0].mxu0
  %1089 = vmatprep.mubr.f32.mxu0 0.0
  %1090 = vmatmul.mubr.f32.gmra.mrb[0].mxu0 %v448
  %v1091 = vpop.f32.mrb[0].mxu0
  %v1092 = vadd.f32 0.0, %v1091
  %v1093 = vpop.f32.mrb[0].mxu0
  %1094 = vmatprep.mubr.f32.mxu0 0.0
  %1095 = vmatmul.mubr.f32.gmra.mrb[0].mxu0 %v451
  %v1096 = vpop.f32.mrb[0].mxu0
  %v1097 = vadd.f32 0.0, %v1096
  %v1098 = vpop.f32.mrb[0].mxu0
  %1099 = vmatprep.mubr.f32.mxu0 0.0
  %1100 = vmatmul.mubr.f32.gmra.mrb[0].mxu0 %v454
  %v1101 = vpop.f32.mrb[0].mxu0
  %v1102 = vadd.f32 0.0, %v1101
  %v1103 = vpop.f32.mrb[0].mxu0
  %1104 = vmatprep.mubr.f32.mxu0 0.0
  %1105 = vmatmul.mubr.f32.gmra.mrb[0].mxu0 %v457
  %v1106 = vpop.f32.mrb[0].mxu0
  %v1107 = vadd.f32 0.0, %v1106
  %v1108 = vpop.f32.mrb[0].mxu0
  %1109 = vmatprep.mubr.f32.mxu0 0.0
  %1110 = vmatmul.mubr.f32.gmra.mrb[0].mxu0 %v460
  %v1111 = vpop.f32.mrb[0].mxu0
  %v1112 = vadd.f32 0.0, %v1111
  %v1113 = vpop.f32.mrb[0].mxu0
  %1114 = vmatprep.mubr.f32.mxu0 0.0
  %1115 = vmatmul.mubr.f32.gmra.mrb[0].mxu0 %v463
  %v1116 = vpop.f32.mrb[0].mxu0
  %v1117 = vadd.f32 0.0, %v1116
  %v1118 = vpop.f32.mrb[0].mxu0
  %1119 = vmatprep.mubr.f32.mxu0 0.0
  %1120 = vmatmul.mubr.f32.gmra.mrb[0].mxu0 %v466
  %v1121 = vpop.f32.mrb[0].mxu0
  %v1122 = vadd.f32 0.0, %v1121
  %v1123 = vpop.f32.mrb[0].mxu0
  %1124 = vmatprep.mubr.f32.mxu0 0.0
  %1125 = vmatmul.mubr.f32.gmra.mrb[0].mxu0 %v469
  %v1126 = vpop.f32.mrb[0].mxu0
  %v1127 = vadd.f32 0.0, %v1126
  %v1128 = vpop.f32.mrb[0].mxu0
  %1129 = vmatprep.mubr.f32.mxu0 0.0
  %1130 = vmatmul.mubr.f32.gmra.mrb[0].mxu0 %v472
  %v1131 = vpop.f32.mrb[0].mxu0
  %v1132 = vadd.f32 0.0, %v1131
  %v1133 = vpop.f32.mrb[0].mxu0
  %1134 = vmatprep.mubr.f32.mxu0 0.0
  %1135 = vmatmul.mubr.f32.gmra.mrb[0].mxu0 %v475
  %v1136 = vpop.f32.mrb[0].mxu0
  %v1137 = vadd.f32 0.0, %v1136
  %v1138 = vpop.f32.mrb[0].mxu0
  %1139 = vmatprep.mubr.f32.mxu0 0.0
  %1140 = vmatmul.mubr.f32.gmra.mrb[0].mxu0 %v478
  %v1141 = vpop.f32.mrb[0].mxu0
  %v1142 = vadd.f32 0.0, %v1141
  %v1143 = vpop.f32.mrb[0].mxu0
  %1144 = vmatprep.mubr.f32.mxu0 0.0
  %1145 = vmatmul.mubr.f32.gmra.mrb[0].mxu0 %v481
  %v1146 = vpop.f32.mrb[0].mxu0
  %v1147 = vadd.f32 0.0, %v1146
  %v1148 = vpop.f32.mrb[0].mxu0
  %1149 = vmatprep.mubr.f32.mxu0 0.0
  %1150 = vmatmul.mubr.f32.gmra.mrb[0].mxu0 %v484
  %v1151 = vpop.f32.mrb[0].mxu0
  %v1152 = vadd.f32 0.0, %v1151
  %v1153 = vpop.f32.mrb[0].mxu0
  %1154 = vmatprep.mubr.f32.mxu0 0.0
  %1155 = vmatmul.mubr.f32.gmra.mrb[0].mxu0 %v487
  %v1156 = vpop.f32.mrb[0].mxu0
  %v1157 = vadd.f32 0.0, %v1156
  %v1158 = vpop.f32.mrb[0].mxu0
  %1159 = vmatprep.mubr.f32.mxu0 0.0
  %1160 = vmatmul.mubr.f32.gmra.mrb[0].mxu0 %v490
  %v1161 = vpop.f32.mrb[0].mxu0
  %v1162 = vadd.f32 0.0, %v1161
  %v1163 = vpop.f32.mrb[0].mxu0
  %1164 = vmatprep.mubr.f32.mxu0 0.0
  %1165 = vmatmul.mubr.f32.gmra.mrb[0].mxu0 %v493
  %v1166 = vpop.f32.mrb[0].mxu0
  %v1167 = vadd.f32 0.0, %v1166
  %v1168 = vpop.f32.mrb[0].mxu0
  %1169 = vmatprep.mubr.f32.mxu0 0.0
  %1170 = vmatmul.mubr.f32.gmra.mrb[0].mxu0 %v496
  %v1171 = vpop.f32.mrb[0].mxu0
  %v1172 = vadd.f32 0.0, %v1171
  %v1173 = vpop.f32.mrb[0].mxu0
  %1174 = vmatprep.mubr.f32.mxu0 0.0
  %1175 = vmatmul.mubr.f32.gmra.mrb[0].mxu0 %v499
  %v1176 = vpop.f32.mrb[0].mxu0
  %v1177 = vadd.f32 0.0, %v1176
  %v1178 = vpop.f32.mrb[0].mxu0
  %1179 = vmatprep.mubr.f32.mxu0 0.0
  %1180 = vmatmul.mubr.f32.gmra.mrb[0].mxu0 %v502
  %v1181 = vpop.f32.mrb[0].mxu0
  %v1182 = vadd.f32 0.0, %v1181
  %v1183 = vpop.f32.mrb[0].mxu0
  %1184 = vmatprep.mubr.f32.mxu0 0.0
  %1185 = vmatmul.mubr.f32.gmra.mrb[0].mxu0 %v505
  %v1186 = vpop.f32.mrb[0].mxu0
  %v1187 = vadd.f32 0.0, %v1186
  %v1188 = vpop.f32.mrb[0].mxu0
  %1189 = vmatprep.mubr.f32.mxu0 0.0
  %1190 = vmatmul.mubr.f32.gmra.mrb[0].mxu0 %v508
  %v1191 = vpop.f32.mrb[0].mxu0
  %v1192 = vadd.f32 0.0, %v1191
  %v1193 = vpop.f32.mrb[0].mxu0
  %1194 = vmatprep.mubr.f32.mxu0 0.0
  %1195 = vmatmul.mubr.f32.gmra.mrb[0].mxu0 %v511
  %v1196 = vpop.f32.mrb[0].mxu0
  %v1197 = vadd.f32 0.0, %v1196
  %v1198 = vpop.f32.mrb[0].mxu0
  %1199 = vmatprep.mubr.f32.mxu0 0.0
  %1200 = vmatmul.mubr.f32.gmra.mrb[0].mxu0 %v514
  %v1201 = vpop.f32.mrb[0].mxu0
  %v1202 = vadd.f32 0.0, %v1201
  %v1203 = vpop.f32.mrb[0].mxu0
  %1204 = vmatprep.mubr.f32.mxu0 0.0
  %1205 = vmatmul.mubr.f32.gmra.mrb[0].mxu0 %v517
  %v1206 = vpop.f32.mrb[0].mxu0
  %v1207 = vadd.f32 0.0, %v1206
  %v1208 = vpop.f32.mrb[0].mxu0
  %1209 = vmatprep.mubr.f32.mxu0 0.0
  %1210 = vmatmul.mubr.f32.gmra.mrb[0].mxu0 %v520
  %v1211 = vpop.f32.mrb[0].mxu0
  %v1212 = vadd.f32 0.0, %v1211
  %v1213 = vpop.f32.mrb[0].mxu0
  %1214 = vmatprep.mubr.f32.mxu0 0.0
  %1215 = vmatmul.mubr.f32.gmra.mrb[0].mxu0 %v523
  %v1216 = vpop.f32.mrb[0].mxu0
  %v1217 = vadd.f32 0.0, %v1216
  %v1218 = vpop.f32.mrb[0].mxu0
  %1219 = vmatprep.mubr.f32.mxu0 0.0
  %1220 = vmatmul.mubr.f32.gmra.mrb[0].mxu0 %v526
  %v1221 = vpop.f32.mrb[0].mxu0
  %v1222 = vadd.f32 0.0, %v1221
  %v1223 = vpop.f32.mrb[0].mxu0
  %1224 = vmatprep.mubr.f32.mxu0 0.0
  %1225 = vmatmul.mubr.f32.gmra.mrb[0].mxu0 %v529
  %v1226 = vpop.f32.mrb[0].mxu0
  %v1227 = vadd.f32 0.0, %v1226
  %v1228 = vpop.f32.mrb[0].mxu0
  %1229 = vmatprep.mubr.f32.mxu0 0.0
  %1230 = vmatmul.mubr.f32.gmra.mrb[0].mxu0 %v532
  %v1231 = vpop.f32.mrb[0].mxu0
  %v1232 = vadd.f32 0.0, %v1231
  %v1233 = vpop.f32.mrb[0].mxu0
  %1234 = vmatprep.mubr.f32.mxu0 0.0
  %1235 = vmatmul.mubr.f32.gmra.mrb[0].mxu0 %v535
  %v1236 = vpop.f32.mrb[0].mxu0
  %v1237 = vadd.f32 0.0, %v1236
  %v1238 = vpop.f32.mrb[0].mxu0
  %1239 = vmatprep.mubr.f32.mxu0 0.0
  %1240 = vmatmul.mubr.f32.gmra.mrb[0].mxu0 %v538
  %v1241 = vpop.f32.mrb[0].mxu0
  %v1242 = vadd.f32 0.0, %v1241
  %v1243 = vpop.f32.mrb[0].mxu0
  %1244 = vdwg.mxu0
  %v1245 = vmax.f32 %v607, 0.0
  %v1246 = vmax.f32 %v612, 0.0
  %v1247 = vmax.f32 %v617, 0.0
  %v1248 = vmax.f32 %v622, 0.0
  %v1249 = vmax.f32 %v627, 0.0
  %v1250 = vmax.f32 %v632, 0.0
  %v1251 = vmax.f32 %v637, 0.0
  %v1252 = vmax.f32 %v642, 0.0
  %v1253 = vmax.f32 %v647, 0.0
  %v1254 = vmax.f32 %v652, 0.0
  %v1255 = vmax.f32 %v657, 0.0
  %v1256 = vmax.f32 %v662, 0.0
  %v1257 = vmax.f32 %v667, 0.0
  %v1258 = vmax.f32 %v672, 0.0
  %v1259 = vmax.f32 %v677, 0.0
  %v1260 = vmax.f32 %v682, 0.0
  %v1261 = vmax.f32 %v687, 0.0
  %v1262 = vmax.f32 %v692, 0.0
  %v1263 = vmax.f32 %v697, 0.0
  %v1264 = vmax.f32 %v702, 0.0
  %v1265 = vmax.f32 %v707, 0.0
  %v1266 = vmax.f32 %v712, 0.0
  %v1267 = vmax.f32 %v717, 0.0
  %v1268 = vmax.f32 %v722, 0.0
  %v1269 = vmax.f32 %v727, 0.0
  %v1270 = vmax.f32 %v732, 0.0
  %v1271 = vmax.f32 %v737, 0.0
  %v1272 = vmax.f32 %v742, 0.0
  %v1273 = vmax.f32 %v747, 0.0
  %v1274 = vmax.f32 %v752, 0.0
  %v1275 = vmax.f32 %v757, 0.0
  %v1276 = vmax.f32 %v762, 0.0
  %v1277 = vmax.f32 %v767, 0.0
  %v1278 = vmax.f32 %v772, 0.0
  %v1279 = vmax.f32 %v777, 0.0
  %v1280 = vmax.f32 %v782, 0.0
  %v1281 = vmax.f32 %v787, 0.0
  %v1282 = vmax.f32 %v792, 0.0
  %v1283 = vmax.f32 %v797, 0.0
  %v1284 = vmax.f32 %v802, 0.0
  %v1285 = vmax.f32 %v807, 0.0
  %v1286 = vmax.f32 %v812, 0.0
  %v1287 = vmax.f32 %v817, 0.0
  %v1288 = vmax.f32 %v822, 0.0
  %v1289 = vmax.f32 %v827, 0.0
  %v1290 = vmax.f32 %v832, 0.0
  %v1291 = vmax.f32 %v837, 0.0
  %v1292 = vmax.f32 %v842, 0.0
  %v1293 = vmax.f32 %v847, 0.0
  %v1294 = vmax.f32 %v852, 0.0
  %v1295 = vmax.f32 %v857, 0.0
  %v1296 = vmax.f32 %v862, 0.0
  %v1297 = vmax.f32 %v867, 0.0
  %v1298 = vmax.f32 %v872, 0.0
  %v1299 = vmax.f32 %v877, 0.0
  %v1300 = vmax.f32 %v882, 0.0
  %v1301 = vmax.f32 %v887, 0.0
  %v1302 = vmax.f32 %v892, 0.0
  %v1303 = vmax.f32 %v897, 0.0
  %v1304 = vmax.f32 %v902, 0.0
  %v1305 = vmax.f32 %v907, 0.0
  %v1306 = vmax.f32 %v912, 0.0
  %v1307 = vmax.f32 %v917, 0.0
  %v1308 = vmax.f32 %v922, 0.0
  %v1309 = vmax.f32 %v927, 0.0
  %v1310 = vmax.f32 %v932, 0.0
  %v1311 = vmax.f32 %v937, 0.0
  %v1312 = vmax.f32 %v942, 0.0
  %v1313 = vmax.f32 %v947, 0.0
  %v1314 = vmax.f32 %v952, 0.0
  %v1315 = vmax.f32 %v957, 0.0
  %v1316 = vmax.f32 %v962, 0.0
  %v1317 = vmax.f32 %v967, 0.0
  %v1318 = vmax.f32 %v972, 0.0
  %v1319 = vmax.f32 %v977, 0.0
  %v1320 = vmax.f32 %v982, 0.0
  %v1321 = vmax.f32 %v987, 0.0
  %v1322 = vmax.f32 %v992, 0.0
  %v1323 = vmax.f32 %v997, 0.0
  %v1324 = vmax.f32 %v1002, 0.0
  %v1325 = vmax.f32 %v1007, 0.0
  %v1326 = vmax.f32 %v1012, 0.0
  %v1327 = vmax.f32 %v1017, 0.0
  %v1328 = vmax.f32 %v1022, 0.0
  %v1329 = vmax.f32 %v1027, 0.0
  %v1330 = vmax.f32 %v1032, 0.0
  %v1331 = vmax.f32 %v1037, 0.0
  %v1332 = vmax.f32 %v1042, 0.0
  %v1333 = vmax.f32 %v1047, 0.0
  %v1334 = vmax.f32 %v1052, 0.0
  %v1335 = vmax.f32 %v1057, 0.0
  %v1336 = vmax.f32 %v1062, 0.0
  %v1337 = vmax.f32 %v1067, 0.0
  %v1338 = vmax.f32 %v1072, 0.0
  %v1339 = vmax.f32 %v1077, 0.0
  %v1340 = vmax.f32 %v1082, 0.0
  %v1341 = vmax.f32 %v1087, 0.0
  %v1342 = vmax.f32 %v1092, 0.0
  %v1343 = vmax.f32 %v1097, 0.0
  %v1344 = vmax.f32 %v1102, 0.0
  %v1345 = vmax.f32 %v1107, 0.0
  %v1346 = vmax.f32 %v1112, 0.0
  %v1347 = vmax.f32 %v1117, 0.0
  %v1348 = vmax.f32 %v1122, 0.0
  %v1349 = vmax.f32 %v1127, 0.0
  %v1350 = vmax.f32 %v1132, 0.0
  %v1351 = vmax.f32 %v1137, 0.0
  %v1352 = vmax.f32 %v1142, 0.0
  %v1353 = vmax.f32 %v1147, 0.0
  %v1354 = vmax.f32 %v1152, 0.0
  %v1355 = vmax.f32 %v1157, 0.0
  %v1356 = vmax.f32 %v1162, 0.0
  %v1357 = vmax.f32 %v1167, 0.0
  %v1358 = vmax.f32 %v1172, 0.0
  %v1359 = vmax.f32 %v1177, 0.0
  %v1360 = vmax.f32 %v1182, 0.0
  %v1361 = vmax.f32 %v1187, 0.0
  %v1362 = vmax.f32 %v1192, 0.0
  %v1363 = vmax.f32 %v1197, 0.0
  %v1364 = vmax.f32 %v1202, 0.0
  %v1365 = vmax.f32 %v1207, 0.0
  %v1366 = vmax.f32 %v1212, 0.0
  %v1367 = vmax.f32 %v1217, 0.0
  %v1368 = vmax.f32 %v1222, 0.0
  %v1369 = vmax.f32 %v1227, 0.0
  %v1370 = vmax.f32 %v1232, 0.0
  %v1371 = vmax.f32 %v1237, 0.0
  %v1372 = vmax.f32 %v1242, 0.0
  %v1373 = vld [vmem:[%s3] sm:$0xff]
  %1375 = vset.pattern.permute.xlu0 0
  %1376 = vperm.xlu0 %1375, %v1373
  %v1377 = vpop.permute.xlu0 %1376
  %1379 = vmatprep.subr.mxu0 0.0
  %1380 = vmatpush1.msra.mxu0 %v1245
  %1381 = vmatprep.subr.mxu0 0.0
  %1382 = vmatpush1.msra.mxu0 %v1246
  %1383 = vmatprep.subr.mxu0 0.0
  %1384 = vmatpush1.msra.mxu0 %v1247
  %1385 = vmatprep.subr.mxu0 0.0
  %1386 = vmatpush1.msra.mxu0 %v1248
  %1387 = vmatprep.subr.mxu0 0.0
  %1388 = vmatpush1.msra.mxu0 %v1249
  %1389 = vmatprep.subr.mxu0 0.0
  %1390 = vmatpush1.msra.mxu0 %v1250
  %1391 = vmatprep.subr.mxu0 0.0
  %1392 = vmatpush1.msra.mxu0 %v1251
  %1393 = vmatprep.subr.mxu0 0.0
  %1394 = vmatpush1.msra.mxu0 %v1252
  %1395 = vmatprep.subr.mxu0 0.0
  %1396 = vmatpush1.msra.mxu0 %v1253
  %1397 = vmatprep.subr.mxu0 0.0
  %1398 = vmatpush1.msra.mxu0 %v1254
  %1399 = vmatprep.subr.mxu0 0.0
  %1400 = vmatpush1.msra.mxu0 %v1255
  %1401 = vmatprep.subr.mxu0 0.0
  %1402 = vmatpush1.msra.mxu0 %v1256
  %1403 = vmatprep.subr.mxu0 0.0
  %1404 = vmatpush1.msra.mxu0 %v1257
  %1405 = vmatprep.subr.mxu0 0.0
  %1406 = vmatpush1.msra.mxu0 %v1258
  %1407 = vmatprep.subr.mxu0 0.0
  %1408 = vmatpush1.msra.mxu0 %v1259
  %1409 = vmatprep.subr.mxu0 0.0
  %1410 = vmatpush1.msra.mxu0 %v1260
  %1411 = vmatprep.subr.mxu0 0.0
  %1412 = vmatpush1.msra.mxu0 %v1261
  %1413 = vmatprep.subr.mxu0 0.0
  %1414 = vmatpush1.msra.mxu0 %v1262
  %1415 = vmatprep.subr.mxu0 0.0
  %1416 = vmatpush1.msra.mxu0 %v1263
  %1417 = vmatprep.subr.mxu0 0.0
  %1418 = vmatpush1.msra.mxu0 %v1264
  %1419 = vmatprep.subr.mxu0 0.0
  %1420 = vmatpush1.msra.mxu0 %v1265
  %1421 = vmatprep.subr.mxu0 0.0
  %1422 = vmatpush1.msra.mxu0 %v1266
  %1423 = vmatprep.subr.mxu0 0.0
  %1424 = vmatpush1.msra.mxu0 %v1267
  %1425 = vmatprep.subr.mxu0 0.0
  %1426 = vmatpush1.msra.mxu0 %v1268
  %1427 = vmatprep.subr.mxu0 0.0
  %1428 = vmatpush1.msra.mxu0 %v1269
  %1429 = vmatprep.subr.mxu0 0.0
  %1430 = vmatpush1.msra.mxu0 %v1270
  %1431 = vmatprep.subr.mxu0 0.0
  %1432 = vmatpush1.msra.mxu0 %v1271
  %1433 = vmatprep.subr.mxu0 0.0
  %1434 = vmatpush1.msra.mxu0 %v1272
  %1435 = vmatprep.subr.mxu0 0.0
  %1436 = vmatpush1.msra.mxu0 %v1273
  %1437 = vmatprep.subr.mxu0 0.0
  %1438 = vmatpush1.msra.mxu0 %v1274
  %1439 = vmatprep.subr.mxu0 0.0
  %1440 = vmatpush1.msra.mxu0 %v1275
  %1441 = vmatprep.subr.mxu0 0.0
  %1442 = vmatpush1.msra.mxu0 %v1276
  %1443 = vmatprep.mubr.f32.mxu0 %v148
  %1444 = vmatmul.mubr.f32.gmra.mrb[0].mxu0 %v147
  %v1445 = vpop.f32.mrb[0].mxu0
  %v1446 = vadd.f32 %v1377, %v1445
  %v1447 = vpop.f32.mrb[0].mxu0
  %1448 = vdwg.mxu0
  %1449 = vmatprep.subr.mxu0 0.0
  %1450 = vmatpush1.msra.mxu0 %v1277
  %1451 = vmatprep.subr.mxu0 0.0
  %1452 = vmatpush1.msra.mxu0 %v1278
  %1453 = vmatprep.subr.mxu0 0.0
  %1454 = vmatpush1.msra.mxu0 %v1279
  %1455 = vmatprep.subr.mxu0 0.0
  %1456 = vmatpush1.msra.mxu0 %v1280
  %1457 = vmatprep.subr.mxu0 0.0
  %1458 = vmatpush1.msra.mxu0 %v1281
  %1459 = vmatprep.subr.mxu0 0.0
  %1460 = vmatpush1.msra.mxu0 %v1282
  %1461 = vmatprep.subr.mxu0 0.0
  %1462 = vmatpush1.msra.mxu0 %v1283
  %1463 = vmatprep.subr.mxu0 0.0
  %1464 = vmatpush1.msra.mxu0 %v1284
  %1465 = vmatprep.subr.mxu0 0.0
  %1466 = vmatpush1.msra.mxu0 %v1285
  %1467 = vmatprep.subr.mxu0 0.0
  %1468 = vmatpush1.msra.mxu0 %v1286
  %1469 = vmatprep.subr.mxu0 0.0
  %1470 = vmatpush1.msra.mxu0 %v1287
  %1471 = vmatprep.subr.mxu0 0.0
  %1472 = vmatpush1.msra.mxu0 %v1288
  %1473 = vmatprep.subr.mxu0 0.0
  %1474 = vmatpush1.msra.mxu0 %v1289
  %1475 = vmatprep.subr.mxu0 0.0
  %1476 = vmatpush1.msra.mxu0 %v1290
  %1477 = vmatprep.subr.mxu0 0.0
  %1478 = vmatpush1.msra.mxu0 %v1291
  %1479 = vmatprep.subr.mxu0 0.0
  %1480 = vmatpush1.msra.mxu0 %v1292
  %1481 = vmatprep.subr.mxu0 0.0
  %1482 = vmatpush1.msra.mxu0 %v1293
  %1483 = vmatprep.subr.mxu0 0.0
  %1484 = vmatpush1.msra.mxu0 %v1294
  %1485 = vmatprep.subr.mxu0 0.0
  %1486 = vmatpush1.msra.mxu0 %v1295
  %1487 = vmatprep.subr.mxu0 0.0
  %1488 = vmatpush1.msra.mxu0 %v1296
  %1489 = vmatprep.subr.mxu0 0.0
  %1490 = vmatpush1.msra.mxu0 %v1297
  %1491 = vmatprep.subr.mxu0 0.0
  %1492 = vmatpush1.msra.mxu0 %v1298
  %1493 = vmatprep.subr.mxu0 0.0
  %1494 = vmatpush1.msra.mxu0 %v1299
  %1495 = vmatprep.subr.mxu0 0.0
  %1496 = vmatpush1.msra.mxu0 %v1300
  %1497 = vmatprep.subr.mxu0 0.0
  %1498 = vmatpush1.msra.mxu0 %v1301
  %1499 = vmatprep.subr.mxu0 0.0
  %1500 = vmatpush1.msra.mxu0 %v1302
  %1501 = vmatprep.subr.mxu0 0.0
  %1502 = vmatpush1.msra.mxu0 %v1303
  %1503 = vmatprep.subr.mxu0 0.0
  %1504 = vmatpush1.msra.mxu0 %v1304
  %1505 = vmatprep.subr.mxu0 0.0
  %1506 = vmatpush1.msra.mxu0 %v1305
  %1507 = vmatprep.subr.mxu0 0.0
  %1508 = vmatpush1.msra.mxu0 %v1306
  %1509 = vmatprep.subr.mxu0 0.0
  %1510 = vmatpush1.msra.mxu0 %v1307
  %1511 = vmatprep.subr.mxu0 0.0
  %1512 = vmatpush1.msra.mxu0 %v1308
  %1513 = vmatprep.mubr.f32.mxu0 %v150
  %1514 = vmatmul.mubr.f32.gmra.mrb[0].mxu0 %v149
  %v1515 = vpop.f32.mrb[0].mxu0
  %v1516 = vadd.f32 %v1446, %v1515
  %v1517 = vpop.f32.mrb[0].mxu0
  %1518 = vdwg.mxu0
  %1519 = vmatprep.subr.mxu0 0.0
  %1520 = vmatpush1.msra.mxu0 %v1309
  %1521 = vmatprep.subr.mxu0 0.0
  %1522 = vmatpush1.msra.mxu0 %v1310
  %1523 = vmatprep.subr.mxu0 0.0
  %1524 = vmatpush1.msra.mxu0 %v1311
  %1525 = vmatprep.subr.mxu0 0.0
  %1526 = vmatpush1.msra.mxu0 %v1312
  %1527 = vmatprep.subr.mxu0 0.0
  %1528 = vmatpush1.msra.mxu0 %v1313
  %1529 = vmatprep.subr.mxu0 0.0
  %1530 = vmatpush1.msra.mxu0 %v1314
  %1531 = vmatprep.subr.mxu0 0.0
  %1532 = vmatpush1.msra.mxu0 %v1315
  %1533 = vmatprep.subr.mxu0 0.0
  %1534 = vmatpush1.msra.mxu0 %v1316
  %1535 = vmatprep.subr.mxu0 0.0
  %1536 = vmatpush1.msra.mxu0 %v1317
  %1537 = vmatprep.subr.mxu0 0.0
  %1538 = vmatpush1.msra.mxu0 %v1318
  %1539 = vmatprep.subr.mxu0 0.0
  %1540 = vmatpush1.msra.mxu0 %v1319
  %1541 = vmatprep.subr.mxu0 0.0
  %1542 = vmatpush1.msra.mxu0 %v1320
  %1543 = vmatprep.subr.mxu0 0.0
  %1544 = vmatpush1.msra.mxu0 %v1321
  %1545 = vmatprep.subr.mxu0 0.0
  %1546 = vmatpush1.msra.mxu0 %v1322
  %1547 = vmatprep.subr.mxu0 0.0
  %1548 = vmatpush1.msra.mxu0 %v1323
  %1549 = vmatprep.subr.mxu0 0.0
  %1550 = vmatpush1.msra.mxu0 %v1324
  %1551 = vmatprep.subr.mxu0 0.0
  %1552 = vmatpush1.msra.mxu0 %v1325
  %1553 = vmatprep.subr.mxu0 0.0
  %1554 = vmatpush1.msra.mxu0 %v1326
  %1555 = vmatprep.subr.mxu0 0.0
  %1556 = vmatpush1.msra.mxu0 %v1327
  %1557 = vmatprep.subr.mxu0 0.0
  %1558 = vmatpush1.msra.mxu0 %v1328
  %1559 = vmatprep.subr.mxu0 0.0
  %1560 = vmatpush1.msra.mxu0 %v1329
  %1561 = vmatprep.subr.mxu0 0.0
  %1562 = vmatpush1.msra.mxu0 %v1330
  %1563 = vmatprep.subr.mxu0 0.0
  %1564 = vmatpush1.msra.mxu0 %v1331
  %1565 = vmatprep.subr.mxu0 0.0
  %1566 = vmatpush1.msra.mxu0 %v1332
  %1567 = vmatprep.subr.mxu0 0.0
  %1568 = vmatpush1.msra.mxu0 %v1333
  %1569 = vmatprep.subr.mxu0 0.0
  %1570 = vmatpush1.msra.mxu0 %v1334
  %1571 = vmatprep.subr.mxu0 0.0
  %1572 = vmatpush1.msra.mxu0 %v1335
  %1573 = vmatprep.subr.mxu0 0.0
  %1574 = vmatpush1.msra.mxu0 %v1336
  %1575 = vmatprep.subr.mxu0 0.0
  %1576 = vmatpush1.msra.mxu0 %v1337
  %1577 = vmatprep.subr.mxu0 0.0
  %1578 = vmatpush1.msra.mxu0 %v1338
  %1579 = vmatprep.subr.mxu0 0.0
  %1580 = vmatpush1.msra.mxu0 %v1339
  %1581 = vmatprep.subr.mxu0 0.0
  %1582 = vmatpush1.msra.mxu0 %v1340
  %1583 = vmatprep.mubr.f32.mxu0 %v152
  %1584 = vmatmul.mubr.f32.gmra.mrb[0].mxu0 %v151
  %v1585 = vpop.f32.mrb[0].mxu0
  %v1586 = vadd.f32 %v1516, %v1585
  %v1587 = vpop.f32.mrb[0].mxu0
  %1588 = vdwg.mxu0
  %1589 = vmatprep.subr.mxu0 0.0
  %1590 = vmatpush1.msra.mxu0 %v1341
  %1591 = vmatprep.subr.mxu0 0.0
  %1592 = vmatpush1.msra.mxu0 %v1342
  %1593 = vmatprep.subr.mxu0 0.0
  %1594 = vmatpush1.msra.mxu0 %v1343
  %1595 = vmatprep.subr.mxu0 0.0
  %1596 = vmatpush1.msra.mxu0 %v1344
  %1597 = vmatprep.subr.mxu0 0.0
  %1598 = vmatpush1.msra.mxu0 %v1345
  %1599 = vmatprep.subr.mxu0 0.0
  %1600 = vmatpush1.msra.mxu0 %v1346
  %1601 = vmatprep.subr.mxu0 0.0
  %1602 = vmatpush1.msra.mxu0 %v1347
  %1603 = vmatprep.subr.mxu0 0.0
  %1604 = vmatpush1.msra.mxu0 %v1348
  %1605 = vmatprep.subr.mxu0 0.0
  %1606 = vmatpush1.msra.mxu0 %v1349
  %1607 = vmatprep.subr.mxu0 0.0
  %1608 = vmatpush1.msra.mxu0 %v1350
  %1609 = vmatprep.subr.mxu0 0.0
  %1610 = vmatpush1.msra.mxu0 %v1351
  %1611 = vmatprep.subr.mxu0 0.0
  %1612 = vmatpush1.msra.mxu0 %v1352
  %1613 = vmatprep.subr.mxu0 0.0
  %1614 = vmatpush1.msra.mxu0 %v1353
  %1615 = vmatprep.subr.mxu0 0.0
  %1616 = vmatpush1.msra.mxu0 %v1354
  %1617 = vmatprep.subr.mxu0 0.0
  %1618 = vmatpush1.msra.mxu0 %v1355
  %1619 = vmatprep.subr.mxu0 0.0
  %1620 = vmatpush1.msra.mxu0 %v1356
  %1621 = vmatprep.subr.mxu0 0.0
  %1622 = vmatpush1.msra.mxu0 %v1357
  %1623 = vmatprep.subr.mxu0 0.0
  %1624 = vmatpush1.msra.mxu0 %v1358
  %1625 = vmatprep.subr.mxu0 0.0
  %1626 = vmatpush1.msra.mxu0 %v1359
  %1627 = vmatprep.subr.mxu0 0.0
  %1628 = vmatpush1.msra.mxu0 %v1360
  %1629 = vmatprep.subr.mxu0 0.0
  %1630 = vmatpush1.msra.mxu0 %v1361
  %1631 = vmatprep.subr.mxu0 0.0
  %1632 = vmatpush1.msra.mxu0 %v1362
  %1633 = vmatprep.subr.mxu0 0.0
  %1634 = vmatpush1.msra.mxu0 %v1363
  %1635 = vmatprep.subr.mxu0 0.0
  %1636 = vmatpush1.msra.mxu0 %v1364
  %1637 = vmatprep.subr.mxu0 0.0
  %1638 = vmatpush1.msra.mxu0 %v1365
  %1639 = vmatprep.subr.mxu0 0.0
  %1640 = vmatpush1.msra.mxu0 %v1366
  %1641 = vmatprep.subr.mxu0 0.0
  %1642 = vmatpush1.msra.mxu0 %v1367
  %1643 = vmatprep.subr.mxu0 0.0
  %1644 = vmatpush1.msra.mxu0 %v1368
  %1645 = vmatprep.subr.mxu0 0.0
  %1646 = vmatpush1.msra.mxu0 %v1369
  %1647 = vmatprep.subr.mxu0 0.0
  %1648 = vmatpush1.msra.mxu0 %v1370
  %1649 = vmatprep.subr.mxu0 0.0
  %1650 = vmatpush1.msra.mxu0 %v1371
  %1651 = vmatprep.subr.mxu0 0.0
  %1652 = vmatpush1.msra.mxu0 %v1372
  %1653 = vmatprep.mubr.f32.mxu0 %v154
  %1654 = vmatmul.mubr.f32.gmra.mrb[0].mxu0 %v153
  %v1655 = vpop.f32.mrb[0].mxu0
  %v1656 = vadd.f32 %v1586, %v1655
  %v1657 = vpop.f32.mrb[0].mxu0
  %1658 = vdwg.mxu0
  %1659 = vst [vmem:[%s4] sm:$0xff] %v1656
  // Predicated region
  $region18: #{testnet_forward.1} parent=0 // pred_check
    _
  $region19: #{testnet_forward.1} parent=0 // pred_check_branch
    %1661 = sbr.rel (0) target = $region21
  $region20: #{testnet_forward.1} parent=0 // pred_region
    _
  $region21: #{testnet_forward.1} parent=0 // pred_fallthru
    _
  // Predicated region
  $region22: #{testnet_forward.1} parent=0 // pred_check
    _
  $region23: #{testnet_forward.1} parent=0 // pred_check_branch
    %1663 = sbr.rel (0) target = $region25
  $region24: #{testnet_forward.1} parent=0 // pred_region
    _
  $region25: #{testnet_forward.1} parent=0 // pred_fallthru
    _

</llo_original>
